<compile_context>
chip_gen: v5e
topology: v5e:2x2
jax: 0.10.0
libtpu: 0.0.40
codegen_flags: <defaults>
</compile_context>

<pallas_src>
import functools

import jax
import jax.numpy as jnp
from jax.experimental import pallas as pl
from jax.experimental.pallas import tpu as pltpu

_EPS = 1e-5
_NEG_SLOPE = 0.01  # nn.LeakyReLU default
_TAP_OFFSETS = tuple((oy, ox) for oy in (-1, 0, 1) for ox in (-1, 0, 1))


def _conv3x3_taps(y, w_ref, mask_ref, shifts):
    """3x3 / stride-1 / pad-1 conv as 9 accumulating per-tap MXU matmuls.

    y:        (C, L) f32 activation, channels on sublanes, lane-stacked pixels.
    w_ref:    (9, Cout, C) bf16 tap weights (tap order matches `shifts`).
    mask_ref: (9, 1, L) f32 per-tap boundary masks (this IS the zero padding;
              it also zeroes every lane a roll pulls across a sample boundary).
    Returns (Cout, L) f32.
    """
    L = y.shape[-1]
    acc = None
    for k, s in enumerate(shifts):
        if s == 0:
            col = y                                        # center tap: always valid
        else:
            col = pltpu.roll(y, (-s) % L, axis=1) * mask_ref[k]   # XLU rotate + f32 mask
        d = jnp.dot(w_ref[k], col.astype(jnp.bfloat16),            # bf16 only at the dot
                    preferred_element_type=jnp.float32)
        acc = d if acc is None else acc + d                # free accumulation on v7x MRB
    return acc


def _conv1_kernel(x_ref, mask_ref, s1_ref, h1_ref, w1_ref, b1_ref,
                  t_ref, st_ref, *, shifts):
    """t = conv1(LeakyReLU(bn1(x))); also emit per-step bn2 partial stats."""
    y = x_ref[...] * s1_ref[...] + h1_ref[...]             # bn1 folded to scale/shift (f32)
    y = jnp.maximum(y, _NEG_SLOPE * y)                     # LeakyReLU as max
    t = _conv3x3_taps(y, w1_ref, mask_ref, shifts) + b1_ref[...]   # (Cout, L) f32
    # bn2 partial statistics from the f32 value, packed into one (Cout, 2) store.
    st_ref[...] = jnp.concatenate(
        [jnp.sum(t, axis=1, keepdims=True),
         jnp.sum(t * t, axis=1, keepdims=True)], axis=1)
    t_ref[...] = t.astype(jnp.bfloat16)                    # bf16 intermediate: half the HBM


def _conv2_kernel(x_ref, t_ref, mask_ref, st_ref, g2_ref, bt2_ref,
                  w2_ref, wid_ref, b_ref, o_ref, *, shifts, inv_cnt):
    """out = conv2(LeakyReLU(bn2(t))) + identity_1x1(x) (+ b2 + bid)."""
    # Finish bn2 batch stats in-kernel (tiny (G, Cout, 2) reduction), so no XLA
    # glue op is serialized between the two pallas_call launches.
    tot = jnp.sum(st_ref[...], axis=0)                     # (Cout, 2)
    m2 = tot[:, 0:1] * inv_cnt
    v2 = jnp.maximum(tot[:, 1:2] * inv_cnt - m2 * m2, 0.0) # clamp single-pass variance
    scale2 = g2_ref[...] * jax.lax.rsqrt(v2 + _EPS)
    shift2 = bt2_ref[...] - m2 * scale2

    z = t_ref[...].astype(jnp.float32) * scale2 + shift2   # bn2 on bf16 t, math in f32
    z = jnp.maximum(z, _NEG_SLOPE * z)                     # LeakyReLU

    # identity 1x1 conv (+ combined bias bid + b2) initializes the accumulator.
    acc = jnp.dot(wid_ref[...], x_ref[...].astype(jnp.bfloat16),
                  preferred_element_type=jnp.float32) + b_ref[...]
    o_ref[...] = acc + _conv3x3_taps(z, w2_ref, mask_ref, shifts)   # lane-dense store


def _samples_per_step(n, hw, max_lanes=8192):
    """Whole samples per grid step.  Keeps >=2 steps (v7x megacore) and caps the
    per-step lane width so blocks stay well inside v7x's 64 MiB VMEM."""
    best = 1
    for d in range(1, max(1, n // 2) + 1):
        if n % d == 0 and d * hw <= max_lanes:
            best = d
    return best


@jax.jit
def resnet_block_forward(x_nchw, p):
    """Pallas forward. Input NCHW f32, output NCHW f32 (matches the PyTorch module)."""
    N, Cin, H, W = x_nchw.shape
    Cout = p["w1"].shape[0]
    HW = H * W

    ns = _samples_per_step(N, HW)          # samples per grid step
    G = N // ns                            # grid size (>=2 when N is even)
    L = ns * HW                            # lanes per step (multiple of HW)

    # Lane-stacked layout: (N, C, H, W) -> (C, N*HW).  Channels sit on sublanes,
    # (sample, pixel) on lanes -> fully lane-dense loads and unmasked stores.
    x2 = jnp.transpose(x_nchw.reshape(N, Cin, HW), (1, 0, 2)).reshape(Cin, N * HW)
    x2 = x2.astype(jnp.float32)

    # --- bn1 batch statistics: one fused XLA reduction over the raw input ----
    m1 = jnp.mean(x2, axis=1)
    v1 = jnp.maximum(jnp.mean(x2 * x2, axis=1) - m1 * m1, 0.0)
    inv1 = jax.lax.rsqrt(v1 + _EPS)
    scale1 = (p["g1"] * inv1).reshape(Cin, 1)
    shift1 = (p["bt1"] - m1 * p["g1"] * inv1).reshape(Cin, 1)

    # --- per-tap boundary masks, computed ONCE (constant-folded by XLA) ------
    pix = jnp.arange(L, dtype=jnp.int32) % HW
    hh = pix // W
    ww = pix % W
    mask = jnp.stack(
        [((hh + oy >= 0) & (hh + oy < H) & (ww + ox >= 0) & (ww + ox < W))
         for (oy, ox) in _TAP_OFFSETS]).astype(jnp.float32).reshape(9, 1, L)
    shifts = tuple(oy * W + ox for (oy, ox) in _TAP_OFFSETS)

    # --- tiny one-time weight repacks: OIHW -> (9, Cout, Cin) bf16 tap mats --
    w1t = jnp.transpose(p["w1"], (2, 3, 0, 1)).reshape(9, Cout, Cin).astype(jnp.bfloat16)
    w2t = jnp.transpose(p["w2"], (2, 3, 0, 1)).reshape(9, Cout, Cout).astype(jnp.bfloat16)
    widm = p["wid"].astype(jnp.bfloat16)                       # (Cout, Cin) 1x1 conv
    b1c = p["b1"].reshape(Cout, 1).astype(jnp.float32)
    bidb2 = (p["bid"] + p["b2"]).reshape(Cout, 1).astype(jnp.float32)
    g2c = p["g2"].reshape(Cout, 1).astype(jnp.float32)
    bt2c = p["bt2"].reshape(Cout, 1).astype(jnp.float32)

    cparams = pltpu.CompilerParams(
        dimension_semantics=("parallel",),     # disjoint lane chunks: independent
        vmem_limit_bytes=32 * 1024 * 1024,
    )

    # --- kernel A: bn1 -> LeakyReLU -> conv1 (+ packed bn2 partial stats) ----
    t2, stats = pl.pallas_call(
        functools.partial(_conv1_kernel, shifts=shifts),
        grid=(G,),
        in_specs=[
            pl.BlockSpec((Cin, L), lambda g: (0, g)),            # x chunk
            pl.BlockSpec((9, 1, L), lambda g: (0, 0, 0)),        # constant masks
            pl.BlockSpec((Cin, 1), lambda g: (0, 0)),            # bn1 scale
            pl.BlockSpec((Cin, 1), lambda g: (0, 0)),            # bn1 shift
            pl.BlockSpec((9, Cout, Cin), lambda g: (0, 0, 0)),   # conv1 taps
            pl.BlockSpec((Cout, 1), lambda g: (0, 0)),           # b1
        ],
        out_specs=[
            pl.BlockSpec((Cout, L), lambda g: (0, g)),           # t (bf16)
            pl.BlockSpec((None, Cout, 2), lambda g: (g, 0, 0)),  # packed stats
        ],
        out_shape=[
            jax.ShapeDtypeStruct((Cout, N * HW), jnp.bfloat16),
            jax.ShapeDtypeStruct((G, Cout, 2), jnp.float32),
        ],
        compiler_params=cparams,
    )(x2, mask, scale1, shift1, w1t, b1c)

    # --- kernel B: bn2 (finished in-kernel) -> LeakyReLU -> conv2 + identity -
    out2 = pl.pallas_call(
        functools.partial(_conv2_kernel, shifts=shifts, inv_cnt=1.0 / float(N * HW)),
        grid=(G,),
        in_specs=[
            pl.BlockSpec((Cin, L), lambda g: (0, g)),            # x (identity path)
            pl.BlockSpec((Cout, L), lambda g: (0, g)),           # t (bf16)
            pl.BlockSpec((9, 1, L), lambda g: (0, 0, 0)),        # constant masks
            pl.BlockSpec((G, Cout, 2), lambda g: (0, 0, 0)),     # all partial stats
            pl.BlockSpec((Cout, 1), lambda g: (0, 0)),           # gamma2
            pl.BlockSpec((Cout, 1), lambda g: (0, 0)),           # beta2
            pl.BlockSpec((9, Cout, Cout), lambda g: (0, 0, 0)),  # conv2 taps
            pl.BlockSpec((Cout, Cin), lambda g: (0, 0)),         # identity 1x1 weight
            pl.BlockSpec((Cout, 1), lambda g: (0, 0)),           # bid + b2
        ],
        out_specs=pl.BlockSpec((Cout, L), lambda g: (0, g)),
        out_shape=jax.ShapeDtypeStruct((Cout, N * HW), jnp.float32),
        compiler_params=cparams,
    )(x2, t2, mask, stats, g2c, bt2c, w2t, widm, bidb2)

    # (C, N*HW) -> NCHW
    return jnp.transpose(out2.reshape(Cout, N, HW), (1, 0, 2)).reshape(N, Cout, H, W)


def ref_forward(x, p):
    """Pure-JAX (XLA) f32 reference in NCHW, for the correctness check."""
    def bn(v, g, b):
        m = v.mean(axis=(0, 2, 3), keepdims=True)
        var = jnp.maximum((v * v).mean(axis=(0, 2, 3), keepdims=True) - m * m, 0.0)
        return (v - m) * jax.lax.rsqrt(var + _EPS) * g.reshape(1, -1, 1, 1) \
            + b.reshape(1, -1, 1, 1)

    def lrelu(v):
        return jnp.where(v > 0, v, _NEG_SLOPE * v)

    def conv3(v, w, b):
        return jax.lax.conv_general_dilated(
            v, w, window_strides=(1, 1), padding="SAME",
            dimension_numbers=("NCHW", "OIHW", "NCHW")) + b.reshape(1, -1, 1, 1)

    y = conv3(lrelu(bn(x, p["g1"], p["bt1"])), p["w1"], p["b1"])
    y = conv3(lrelu(bn(y, p["g2"], p["bt2"])), p["w2"], p["b2"])
    iden = jnp.einsum("nchw,oc->nohw", x, p["wid"]) + p["bid"].reshape(1, -1, 1, 1)
    return y + iden


if __name__ == "__main__":
    N, Cin, H, W = 2, 4, 16, 16
    Cout = 8

    key = jax.random.PRNGKey(0)
    ks = jax.random.split(key, 7)
    x_nchw = jax.random.normal(ks[0], (N, Cin, H, W), jnp.float32)

    # PyTorch-native parameter layouts (Conv2d OIHW weights, per-channel vectors).
    params = dict(
        g1=jnp.ones((Cin,), jnp.float32),      # BatchNorm2d default gamma
        bt1=jnp.zeros((Cin,), jnp.float32),    # BatchNorm2d default beta
        w1=0.1 * jax.random.normal(ks[1], (Cout, Cin, 3, 3), jnp.float32),
        b1=0.1 * jax.random.normal(ks[2], (Cout,), jnp.float32),
        g2=jnp.ones((Cout,), jnp.float32),
        bt2=jnp.zeros((Cout,), jnp.float32),
        w2=0.1 * jax.random.normal(ks[3], (Cout, Cout, 3, 3), jnp.float32),
        b2=0.1 * jax.random.normal(ks[4], (Cout,), jnp.float32),
        wid=0.1 * jax.random.normal(ks[5], (Cout, Cin), jnp.float32),   # 1x1 identity conv
        bid=0.1 * jax.random.normal(ks[6], (Cout,), jnp.float32),
    )

    out = resnet_block_forward(x_nchw, params)
    out = jax.block_until_ready(out)
    assert out.shape == (N, Cout, H, W), out.shape

    ref = ref_forward(x_nchw, params)
    err = float(jnp.max(jnp.abs(out - ref)))
    # bf16 MXU inputs + bf16 intermediate (f32 accumulation) -> ~1e-2 worst case here.
    assert err < 5e-2, f"max abs error vs f32 reference: {err}"

    print("KERNEL_OK")
</pallas_src>

<mosaic_0001>
module attributes {stable_mosaic.version = 11 : i64} {
  func.func @_conv1_kernel(%arg0: i32, %arg1: memref<4x256xf32, #tpu.memory_space<vmem>>, %arg2: memref<9x1x256xf32, #tpu.memory_space<vmem>>, %arg3: memref<4x1xf32, #tpu.memory_space<vmem>>, %arg4: memref<4x1xf32, #tpu.memory_space<vmem>>, %arg5: memref<9x8x4xbf16, #tpu.memory_space<vmem>>, %arg6: memref<8x1xf32, #tpu.memory_space<vmem>>, %arg7: memref<8x256xbf16, #tpu.memory_space<vmem>>, %arg8: memref<1x8x2xf32, #tpu.memory_space<vmem>>) attributes {dimension_semantics = [#tpu.dimension_semantics<parallel>], iteration_bounds = array<i64: 2>, scalar_prefetch = 0 : i64, scratch_operands = 0 : i64, tpu.core_type = #tpu.core_type<tc>, window_params = [{transform_indices = @transform_0, window_bounds = array<i64: 4, 256>}, {pipeline_mode = #tpu.pipeline_mode<synchronous>, transform_indices = @transform_1, window_bounds = array<i64: 9, 1, 256>}, {pipeline_mode = #tpu.pipeline_mode<synchronous>, transform_indices = @transform_2, window_bounds = array<i64: 4, 1>}, {pipeline_mode = #tpu.pipeline_mode<synchronous>, transform_indices = @transform_3, window_bounds = array<i64: 4, 1>}, {pipeline_mode = #tpu.pipeline_mode<synchronous>, transform_indices = @transform_4, window_bounds = array<i64: 9, 8, 4>}, {pipeline_mode = #tpu.pipeline_mode<synchronous>, transform_indices = @transform_5, window_bounds = array<i64: 8, 1>}, {transform_indices = @transform_6, window_bounds = array<i64: 8, 256>}, {transform_indices = @transform_7, window_bounds = array<i64: 1, 8, 2>}]} {
    %c0 = arith.constant 0 : index
    %c0_0 = arith.constant 0 : index
    %0 = vector.load %arg1[%c0, %c0_0] : memref<4x256xf32, #tpu.memory_space<vmem>>, vector<4x256xf32>
    %c0_1 = arith.constant 0 : index
    %c0_2 = arith.constant 0 : index
    %1 = vector.load %arg3[%c0_1, %c0_2] : memref<4x1xf32, #tpu.memory_space<vmem>>, vector<4x1xf32>
    %2 = vector.broadcast %1 : vector<4x1xf32> to vector<4x256xf32>
    %3 = arith.mulf %0, %2 : vector<4x256xf32>
    %c0_3 = arith.constant 0 : index
    %c0_4 = arith.constant 0 : index
    %4 = vector.load %arg4[%c0_3, %c0_4] : memref<4x1xf32, #tpu.memory_space<vmem>>, vector<4x1xf32>
    %5 = vector.broadcast %4 : vector<4x1xf32> to vector<4x256xf32>
    %6 = arith.addf %3, %5 : vector<4x256xf32>
    %cst = arith.constant 0.00999999977 : f32
    %7 = vector.broadcast %cst : f32 to vector<4x256xf32>
    %8 = arith.mulf %7, %6 : vector<4x256xf32>
    %9 = arith.maximumf %6, %8 : vector<4x256xf32>
    %c17_i32 = arith.constant 17 : i32
    %10 = tpu.dynamic_rotate %9 by %c17_i32 dim 1 : vector<4x256xf32>, i32 -> vector<4x256xf32>
    %c0_5 = arith.constant 0 : index
    %c0_6 = arith.constant 0 : index
    %c0_7 = arith.constant 0 : index
    %11 = vector.load %arg2[%c0_5, %c0_6, %c0_7] : memref<9x1x256xf32, #tpu.memory_space<vmem>>, vector<1x1x256xf32>
    %12 = vector.shape_cast %11 : vector<1x1x256xf32> to vector<1x256xf32>
    %13 = vector.broadcast %12 : vector<1x256xf32> to vector<4x256xf32>
    %14 = arith.mulf %10, %13 : vector<4x256xf32>
    %c0_8 = arith.constant 0 : index
    %c0_9 = arith.constant 0 : index
    %c0_10 = arith.constant 0 : index
    %15 = vector.load %arg5[%c0_8, %c0_9, %c0_10] : memref<9x8x4xbf16, #tpu.memory_space<vmem>>, vector<1x8x4xbf16>
    %16 = vector.shape_cast %15 : vector<1x8x4xbf16> to vector<8x4xbf16>
    %17 = arith.truncf %14 : vector<4x256xf32> to vector<4x256xbf16>
    %cst_11 = arith.constant dense<0.000000e+00> : vector<8x256xf32>
    %18 = tpu.matmul %16, %17, %cst_11 {dimension_numbers = #tpu.dot_dimension_numbers<[1], [0], [0], [1], [0, 0, 1, 1], [], []>} : vector<8x4xbf16>, vector<4x256xbf16>, vector<8x256xf32> -> vector<8x256xf32>
    %c16_i32 = arith.constant 16 : i32
    %19 = tpu.dynamic_rotate %9 by %c16_i32 dim 1 : vector<4x256xf32>, i32 -> vector<4x256xf32>
    %c1 = arith.constant 1 : index
    %c0_12 = arith.constant 0 : index
    %c0_13 = arith.constant 0 : index
    %20 = vector.load %arg2[%c1, %c0_12, %c0_13] : memref<9x1x256xf32, #tpu.memory_space<vmem>>, vector<1x1x256xf32>
    %21 = vector.shape_cast %20 : vector<1x1x256xf32> to vector<1x256xf32>
    %22 = vector.broadcast %21 : vector<1x256xf32> to vector<4x256xf32>
    %23 = arith.mulf %19, %22 : vector<4x256xf32>
    %c1_14 = arith.constant 1 : index
    %c0_15 = arith.constant 0 : index
    %c0_16 = arith.constant 0 : index
    %24 = vector.load %arg5[%c1_14, %c0_15, %c0_16] : memref<9x8x4xbf16, #tpu.memory_space<vmem>>, vector<1x8x4xbf16>
    %25 = vector.shape_cast %24 : vector<1x8x4xbf16> to vector<8x4xbf16>
    %26 = arith.truncf %23 : vector<4x256xf32> to vector<4x256xbf16>
    %cst_17 = arith.constant dense<0.000000e+00> : vector<8x256xf32>
    %27 = tpu.matmul %25, %26, %cst_17 {dimension_numbers = #tpu.dot_dimension_numbers<[1], [0], [0], [1], [0, 0, 1, 1], [], []>} : vector<8x4xbf16>, vector<4x256xbf16>, vector<8x256xf32> -> vector<8x256xf32>
    %28 = arith.addf %18, %27 : vector<8x256xf32>
    %c15_i32 = arith.constant 15 : i32
    %29 = tpu.dynamic_rotate %9 by %c15_i32 dim 1 : vector<4x256xf32>, i32 -> vector<4x256xf32>
    %c2 = arith.constant 2 : index
    %c0_18 = arith.constant 0 : index
    %c0_19 = arith.constant 0 : index
    %30 = vector.load %arg2[%c2, %c0_18, %c0_19] : memref<9x1x256xf32, #tpu.memory_space<vmem>>, vector<1x1x256xf32>
    %31 = vector.shape_cast %30 : vector<1x1x256xf32> to vector<1x256xf32>
    %32 = vector.broadcast %31 : vector<1x256xf32> to vector<4x256xf32>
    %33 = arith.mulf %29, %32 : vector<4x256xf32>
    %c2_20 = arith.constant 2 : index
    %c0_21 = arith.constant 0 : index
    %c0_22 = arith.constant 0 : index
    %34 = vector.load %arg5[%c2_20, %c0_21, %c0_22] : memref<9x8x4xbf16, #tpu.memory_space<vmem>>, vector<1x8x4xbf16>
    %35 = vector.shape_cast %34 : vector<1x8x4xbf16> to vector<8x4xbf16>
    %36 = arith.truncf %33 : vector<4x256xf32> to vector<4x256xbf16>
    %cst_23 = arith.constant dense<0.000000e+00> : vector<8x256xf32>
    %37 = tpu.matmul %35, %36, %cst_23 {dimension_numbers = #tpu.dot_dimension_numbers<[1], [0], [0], [1], [0, 0, 1, 1], [], []>} : vector<8x4xbf16>, vector<4x256xbf16>, vector<8x256xf32> -> vector<8x256xf32>
    %38 = arith.addf %28, %37 : vector<8x256xf32>
    %c1_i32 = arith.constant 1 : i32
    %39 = tpu.dynamic_rotate %9 by %c1_i32 dim 1 : vector<4x256xf32>, i32 -> vector<4x256xf32>
    %c3 = arith.constant 3 : index
    %c0_24 = arith.constant 0 : index
    %c0_25 = arith.constant 0 : index
    %40 = vector.load %arg2[%c3, %c0_24, %c0_25] : memref<9x1x256xf32, #tpu.memory_space<vmem>>, vector<1x1x256xf32>
    %41 = vector.shape_cast %40 : vector<1x1x256xf32> to vector<1x256xf32>
    %42 = vector.broadcast %41 : vector<1x256xf32> to vector<4x256xf32>
    %43 = arith.mulf %39, %42 : vector<4x256xf32>
    %c3_26 = arith.constant 3 : index
    %c0_27 = arith.constant 0 : index
    %c0_28 = arith.constant 0 : index
    %44 = vector.load %arg5[%c3_26, %c0_27, %c0_28] : memref<9x8x4xbf16, #tpu.memory_space<vmem>>, vector<1x8x4xbf16>
    %45 = vector.shape_cast %44 : vector<1x8x4xbf16> to vector<8x4xbf16>
    %46 = arith.truncf %43 : vector<4x256xf32> to vector<4x256xbf16>
    %cst_29 = arith.constant dense<0.000000e+00> : vector<8x256xf32>
    %47 = tpu.matmul %45, %46, %cst_29 {dimension_numbers = #tpu.dot_dimension_numbers<[1], [0], [0], [1], [0, 0, 1, 1], [], []>} : vector<8x4xbf16>, vector<4x256xbf16>, vector<8x256xf32> -> vector<8x256xf32>
    %48 = arith.addf %38, %47 : vector<8x256xf32>
    %c4 = arith.constant 4 : index
    %c0_30 = arith.constant 0 : index
    %c0_31 = arith.constant 0 : index
    %49 = vector.load %arg5[%c4, %c0_30, %c0_31] : memref<9x8x4xbf16, #tpu.memory_space<vmem>>, vector<1x8x4xbf16>
    %50 = vector.shape_cast %49 : vector<1x8x4xbf16> to vector<8x4xbf16>
    %51 = arith.truncf %9 : vector<4x256xf32> to vector<4x256xbf16>
    %cst_32 = arith.constant dense<0.000000e+00> : vector<8x256xf32>
    %52 = tpu.matmul %50, %51, %cst_32 {dimension_numbers = #tpu.dot_dimension_numbers<[1], [0], [0], [1], [0, 0, 1, 1], [], []>} : vector<8x4xbf16>, vector<4x256xbf16>, vector<8x256xf32> -> vector<8x256xf32>
    %53 = arith.addf %48, %52 : vector<8x256xf32>
    %c255_i32 = arith.constant 255 : i32
    %54 = tpu.dynamic_rotate %9 by %c255_i32 dim 1 : vector<4x256xf32>, i32 -> vector<4x256xf32>
    %c5 = arith.constant 5 : index
    %c0_33 = arith.constant 0 : index
    %c0_34 = arith.constant 0 : index
    %55 = vector.load %arg2[%c5, %c0_33, %c0_34] : memref<9x1x256xf32, #tpu.memory_space<vmem>>, vector<1x1x256xf32>
    %56 = vector.shape_cast %55 : vector<1x1x256xf32> to vector<1x256xf32>
    %57 = vector.broadcast %56 : vector<1x256xf32> to vector<4x256xf32>
    %58 = arith.mulf %54, %57 : vector<4x256xf32>
    %c5_35 = arith.constant 5 : index
    %c0_36 = arith.constant 0 : index
    %c0_37 = arith.constant 0 : index
    %59 = vector.load %arg5[%c5_35, %c0_36, %c0_37] : memref<9x8x4xbf16, #tpu.memory_space<vmem>>, vector<1x8x4xbf16>
    %60 = vector.shape_cast %59 : vector<1x8x4xbf16> to vector<8x4xbf16>
    %61 = arith.truncf %58 : vector<4x256xf32> to vector<4x256xbf16>
    %cst_38 = arith.constant dense<0.000000e+00> : vector<8x256xf32>
    %62 = tpu.matmul %60, %61, %cst_38 {dimension_numbers = #tpu.dot_dimension_numbers<[1], [0], [0], [1], [0, 0, 1, 1], [], []>} : vector<8x4xbf16>, vector<4x256xbf16>, vector<8x256xf32> -> vector<8x256xf32>
    %63 = arith.addf %53, %62 : vector<8x256xf32>
    %c241_i32 = arith.constant 241 : i32
    %64 = tpu.dynamic_rotate %9 by %c241_i32 dim 1 : vector<4x256xf32>, i32 -> vector<4x256xf32>
    %c6 = arith.constant 6 : index
    %c0_39 = arith.constant 0 : index
    %c0_40 = arith.constant 0 : index
    %65 = vector.load %arg2[%c6, %c0_39, %c0_40] : memref<9x1x256xf32, #tpu.memory_space<vmem>>, vector<1x1x256xf32>
    %66 = vector.shape_cast %65 : vector<1x1x256xf32> to vector<1x256xf32>
    %67 = vector.broadcast %66 : vector<1x256xf32> to vector<4x256xf32>
    %68 = arith.mulf %64, %67 : vector<4x256xf32>
    %c6_41 = arith.constant 6 : index
    %c0_42 = arith.constant 0 : index
    %c0_43 = arith.constant 0 : index
    %69 = vector.load %arg5[%c6_41, %c0_42, %c0_43] : memref<9x8x4xbf16, #tpu.memory_space<vmem>>, vector<1x8x4xbf16>
    %70 = vector.shape_cast %69 : vector<1x8x4xbf16> to vector<8x4xbf16>
    %71 = arith.truncf %68 : vector<4x256xf32> to vector<4x256xbf16>
    %cst_44 = arith.constant dense<0.000000e+00> : vector<8x256xf32>
    %72 = tpu.matmul %70, %71, %cst_44 {dimension_numbers = #tpu.dot_dimension_numbers<[1], [0], [0], [1], [0, 0, 1, 1], [], []>} : vector<8x4xbf16>, vector<4x256xbf16>, vector<8x256xf32> -> vector<8x256xf32>
    %73 = arith.addf %63, %72 : vector<8x256xf32>
    %c240_i32 = arith.constant 240 : i32
    %74 = tpu.dynamic_rotate %9 by %c240_i32 dim 1 : vector<4x256xf32>, i32 -> vector<4x256xf32>
    %c7 = arith.constant 7 : index
    %c0_45 = arith.constant 0 : index
    %c0_46 = arith.constant 0 : index
    %75 = vector.load %arg2[%c7, %c0_45, %c0_46] : memref<9x1x256xf32, #tpu.memory_space<vmem>>, vector<1x1x256xf32>
    %76 = vector.shape_cast %75 : vector<1x1x256xf32> to vector<1x256xf32>
    %77 = vector.broadcast %76 : vector<1x256xf32> to vector<4x256xf32>
    %78 = arith.mulf %74, %77 : vector<4x256xf32>
    %c7_47 = arith.constant 7 : index
    %c0_48 = arith.constant 0 : index
    %c0_49 = arith.constant 0 : index
    %79 = vector.load %arg5[%c7_47, %c0_48, %c0_49] : memref<9x8x4xbf16, #tpu.memory_space<vmem>>, vector<1x8x4xbf16>
    %80 = vector.shape_cast %79 : vector<1x8x4xbf16> to vector<8x4xbf16>
    %81 = arith.truncf %78 : vector<4x256xf32> to vector<4x256xbf16>
    %cst_50 = arith.constant dense<0.000000e+00> : vector<8x256xf32>
    %82 = tpu.matmul %80, %81, %cst_50 {dimension_numbers = #tpu.dot_dimension_numbers<[1], [0], [0], [1], [0, 0, 1, 1], [], []>} : vector<8x4xbf16>, vector<4x256xbf16>, vector<8x256xf32> -> vector<8x256xf32>
    %83 = arith.addf %73, %82 : vector<8x256xf32>
    %c239_i32 = arith.constant 239 : i32
    %84 = tpu.dynamic_rotate %9 by %c239_i32 dim 1 : vector<4x256xf32>, i32 -> vector<4x256xf32>
    %c8 = arith.constant 8 : index
    %c0_51 = arith.constant 0 : index
    %c0_52 = arith.constant 0 : index
    %85 = vector.load %arg2[%c8, %c0_51, %c0_52] : memref<9x1x256xf32, #tpu.memory_space<vmem>>, vector<1x1x256xf32>
    %86 = vector.shape_cast %85 : vector<1x1x256xf32> to vector<1x256xf32>
    %87 = vector.broadcast %86 : vector<1x256xf32> to vector<4x256xf32>
    %88 = arith.mulf %84, %87 : vector<4x256xf32>
    %c8_53 = arith.constant 8 : index
    %c0_54 = arith.constant 0 : index
    %c0_55 = arith.constant 0 : index
    %89 = vector.load %arg5[%c8_53, %c0_54, %c0_55] : memref<9x8x4xbf16, #tpu.memory_space<vmem>>, vector<1x8x4xbf16>
    %90 = vector.shape_cast %89 : vector<1x8x4xbf16> to vector<8x4xbf16>
    %91 = arith.truncf %88 : vector<4x256xf32> to vector<4x256xbf16>
    %cst_56 = arith.constant dense<0.000000e+00> : vector<8x256xf32>
    %92 = tpu.matmul %90, %91, %cst_56 {dimension_numbers = #tpu.dot_dimension_numbers<[1], [0], [0], [1], [0, 0, 1, 1], [], []>} : vector<8x4xbf16>, vector<4x256xbf16>, vector<8x256xf32> -> vector<8x256xf32>
    %93 = arith.addf %83, %92 : vector<8x256xf32>
    %c0_57 = arith.constant 0 : index
    %c0_58 = arith.constant 0 : index
    %94 = vector.load %arg6[%c0_57, %c0_58] : memref<8x1xf32, #tpu.memory_space<vmem>>, vector<8x1xf32>
    %95 = vector.broadcast %94 : vector<8x1xf32> to vector<8x256xf32>
    %96 = arith.addf %93, %95 : vector<8x256xf32>
    %cst_59 = arith.constant dense<0.000000e+00> : vector<8xf32>
    %97 = vector.multi_reduction <add>, %96, %cst_59 [1] : vector<8x256xf32> to vector<8xf32>
    %98 = vector.shape_cast %97 : vector<8xf32> to vector<8x1xf32>
    %99 = arith.mulf %96, %96 : vector<8x256xf32>
    %cst_60 = arith.constant dense<0.000000e+00> : vector<8xf32>
    %100 = vector.multi_reduction <add>, %99, %cst_60 [1] : vector<8x256xf32> to vector<8xf32>
    %101 = vector.shape_cast %100 : vector<8xf32> to vector<8x1xf32>
    %102 = tpu.concatenate %98, %101 in 1 : vector<8x1xf32>, vector<8x1xf32> -> vector<8x2xf32>
    %c0_61 = arith.constant 0 : index
    %c0_62 = arith.constant 0 : index
    %c0_63 = arith.constant 0 : index
    %103 = vector.load %arg8[%c0_61, %c0_62, %c0_63] : memref<1x8x2xf32, #tpu.memory_space<vmem>>, vector<1x8x2xf32>
    %104 = vector.shape_cast %103 : vector<1x8x2xf32> to vector<8x2xf32>
    %105 = vector.shape_cast %102 : vector<8x2xf32> to vector<1x8x2xf32>
    tpu.vector_store %arg8[%c0_61, %c0_62, %c0_63], %105 {strides = array<i32>} : memref<1x8x2xf32, #tpu.memory_space<vmem>>, vector<1x8x2xf32>,
    %106 = arith.truncf %96 : vector<8x256xf32> to vector<8x256xbf16>
    %c0_64 = arith.constant 0 : index
    %c0_65 = arith.constant 0 : index
    %107 = vector.load %arg7[%c0_64, %c0_65] : memref<8x256xbf16, #tpu.memory_space<vmem>>, vector<8x256xbf16>
    tpu.vector_store %arg7[%c0_64, %c0_65], %106 {strides = array<i32>} : memref<8x256xbf16, #tpu.memory_space<vmem>>, vector<8x256xbf16>,
    return
  }
  func.func @transform_0(%arg0: i32) -> (i32, i32) {
    %c0_i32 = arith.constant 0 : i32
    %c0_i32_0 = arith.constant 0 : i32
    return %c0_i32, %arg0 : i32, i32
  }
  func.func @transform_1(%arg0: i32) -> (i32, i32, i32) {
    %c0_i32 = arith.constant 0 : i32
    %c0_i32_0 = arith.constant 0 : i32
    %c0_i32_1 = arith.constant 0 : i32
    %c0_i32_2 = arith.constant 0 : i32
    return %c0_i32, %c0_i32_0, %c0_i32_1 : i32, i32, i32
  }
  func.func @transform_2(%arg0: i32) -> (i32, i32) {
    %c0_i32 = arith.constant 0 : i32
    %c0_i32_0 = arith.constant 0 : i32
    %c0_i32_1 = arith.constant 0 : i32
    return %c0_i32, %c0_i32_0 : i32, i32
  }
  func.func @transform_3(%arg0: i32) -> (i32, i32) {
    %c0_i32 = arith.constant 0 : i32
    %c0_i32_0 = arith.constant 0 : i32
    %c0_i32_1 = arith.constant 0 : i32
    return %c0_i32, %c0_i32_0 : i32, i32
  }
  func.func @transform_4(%arg0: i32) -> (i32, i32, i32) {
    %c0_i32 = arith.constant 0 : i32
    %c0_i32_0 = arith.constant 0 : i32
    %c0_i32_1 = arith.constant 0 : i32
    %c0_i32_2 = arith.constant 0 : i32
    return %c0_i32, %c0_i32_0, %c0_i32_1 : i32, i32, i32
  }
  func.func @transform_5(%arg0: i32) -> (i32, i32) {
    %c0_i32 = arith.constant 0 : i32
    %c0_i32_0 = arith.constant 0 : i32
    %c0_i32_1 = arith.constant 0 : i32
    return %c0_i32, %c0_i32_0 : i32, i32
  }
  func.func @transform_6(%arg0: i32) -> (i32, i32) {
    %c0_i32 = arith.constant 0 : i32
    %c0_i32_0 = arith.constant 0 : i32
    return %c0_i32, %arg0 : i32, i32
  }
  func.func @transform_7(%arg0: i32) -> (i32, i32, i32) {
    %c0_i32 = arith.constant 0 : i32
    %c0_i32_0 = arith.constant 0 : i32
    %c0_i32_1 = arith.constant 0 : i32
    return %arg0, %c0_i32, %c0_i32_0 : i32, i32, i32
  }
}

module attributes {stable_mosaic.version = 11 : i64} {
  func.func @_conv2_kernel(%arg0: i32, %arg1: memref<4x256xf32, #tpu.memory_space<vmem>>, %arg2: memref<8x256xbf16, #tpu.memory_space<vmem>>, %arg3: memref<9x1x256xf32, #tpu.memory_space<vmem>>, %arg4: memref<2x8x2xf32, #tpu.memory_space<vmem>>, %arg5: memref<8x1xf32, #tpu.memory_space<vmem>>, %arg6: memref<8x1xf32, #tpu.memory_space<vmem>>, %arg7: memref<9x8x8xbf16, #tpu.memory_space<vmem>>, %arg8: memref<8x4xbf16, #tpu.memory_space<vmem>>, %arg9: memref<8x1xf32, #tpu.memory_space<vmem>>, %arg10: memref<8x256xf32, #tpu.memory_space<vmem>>) attributes {dimension_semantics = [#tpu.dimension_semantics<parallel>], iteration_bounds = array<i64: 2>, scalar_prefetch = 0 : i64, scratch_operands = 0 : i64, tpu.core_type = #tpu.core_type<tc>, window_params = [{transform_indices = @transform_0, window_bounds = array<i64: 4, 256>}, {transform_indices = @transform_1, window_bounds = array<i64: 8, 256>}, {pipeline_mode = #tpu.pipeline_mode<synchronous>, transform_indices = @transform_2, window_bounds = array<i64: 9, 1, 256>}, {pipeline_mode = #tpu.pipeline_mode<synchronous>, transform_indices = @transform_3, window_bounds = array<i64: 2, 8, 2>}, {pipeline_mode = #tpu.pipeline_mode<synchronous>, transform_indices = @transform_4, window_bounds = array<i64: 8, 1>}, {pipeline_mode = #tpu.pipeline_mode<synchronous>, transform_indices = @transform_5, window_bounds = array<i64: 8, 1>}, {pipeline_mode = #tpu.pipeline_mode<synchronous>, transform_indices = @transform_6, window_bounds = array<i64: 9, 8, 8>}, {pipeline_mode = #tpu.pipeline_mode<synchronous>, transform_indices = @transform_7, window_bounds = array<i64: 8, 4>}, {pipeline_mode = #tpu.pipeline_mode<synchronous>, transform_indices = @transform_8, window_bounds = array<i64: 8, 1>}, {transform_indices = @transform_9, window_bounds = array<i64: 8, 256>}]} {
    %c0 = arith.constant 0 : index
    %c0_0 = arith.constant 0 : index
    %c0_1 = arith.constant 0 : index
    %0 = vector.load %arg4[%c0, %c0_0, %c0_1] : memref<2x8x2xf32, #tpu.memory_space<vmem>>, vector<2x8x2xf32>
    %cst = arith.constant dense<0.000000e+00> : vector<8x2xf32>
    %1 = vector.multi_reduction <add>, %0, %cst [0] : vector<2x8x2xf32> to vector<8x2xf32>
    %2 = vector.extract_strided_slice %1 {offsets = [0, 0], sizes = [8, 1], strides = [1, 1]} : vector<8x2xf32> to vector<8x1xf32>
    %cst_2 = arith.constant 0.001953125 : f32
    %3 = vector.broadcast %cst_2 : f32 to vector<8x1xf32>
    %4 = arith.mulf %2, %3 : vector<8x1xf32>
    %5 = vector.extract_strided_slice %1 {offsets = [0, 1], sizes = [8, 1], strides = [1, 1]} : vector<8x2xf32> to vector<8x1xf32>
    %cst_3 = arith.constant 0.001953125 : f32
    %6 = vector.broadcast %cst_3 : f32 to vector<8x1xf32>
    %7 = arith.mulf %5, %6 : vector<8x1xf32>
    %8 = arith.mulf %4, %4 : vector<8x1xf32>
    %9 = arith.subf %7, %8 : vector<8x1xf32>
    %cst_4 = arith.constant 0.000000e+00 : f32
    %10 = vector.broadcast %cst_4 : f32 to vector<8x1xf32>
    %11 = arith.maximumf %9, %10 : vector<8x1xf32>
    %c0_5 = arith.constant 0 : index
    %c0_6 = arith.constant 0 : index
    %12 = vector.load %arg5[%c0_5, %c0_6] : memref<8x1xf32, #tpu.memory_space<vmem>>, vector<8x1xf32>
    %cst_7 = arith.constant 9.99999974E-6 : f32
    %13 = vector.broadcast %cst_7 : f32 to vector<8x1xf32>
    %14 = arith.addf %11, %13 : vector<8x1xf32>
    %15 = math.rsqrt %14 : vector<8x1xf32>
    %16 = arith.mulf %12, %15 : vector<8x1xf32>
    %c0_8 = arith.constant 0 : index
    %c0_9 = arith.constant 0 : index
    %17 = vector.load %arg6[%c0_8, %c0_9] : memref<8x1xf32, #tpu.memory_space<vmem>>, vector<8x1xf32>
    %18 = arith.mulf %4, %16 : vector<8x1xf32>
    %19 = arith.subf %17, %18 : vector<8x1xf32>
    %c0_10 = arith.constant 0 : index
    %c0_11 = arith.constant 0 : index
    %20 = vector.load %arg2[%c0_10, %c0_11] : memref<8x256xbf16, #tpu.memory_space<vmem>>, vector<8x256xbf16>
    %21 = arith.extf %20 : vector<8x256xbf16> to vector<8x256xf32>
    %22 = vector.broadcast %16 : vector<8x1xf32> to vector<8x256xf32>
    %23 = arith.mulf %21, %22 : vector<8x256xf32>
    %24 = vector.broadcast %19 : vector<8x1xf32> to vector<8x256xf32>
    %25 = arith.addf %23, %24 : vector<8x256xf32>
    %cst_12 = arith.constant 0.00999999977 : f32
    %26 = vector.broadcast %cst_12 : f32 to vector<8x256xf32>
    %27 = arith.mulf %26, %25 : vector<8x256xf32>
    %28 = arith.maximumf %25, %27 : vector<8x256xf32>
    %c0_13 = arith.constant 0 : index
    %c0_14 = arith.constant 0 : index
    %29 = vector.load %arg8[%c0_13, %c0_14] : memref<8x4xbf16, #tpu.memory_space<vmem>>, vector<8x4xbf16>
    %c0_15 = arith.constant 0 : index
    %c0_16 = arith.constant 0 : index
    %30 = vector.load %arg1[%c0_15, %c0_16] : memref<4x256xf32, #tpu.memory_space<vmem>>, vector<4x256xf32>
    %31 = arith.truncf %30 : vector<4x256xf32> to vector<4x256xbf16>
    %cst_17 = arith.constant dense<0.000000e+00> : vector<8x256xf32>
    %32 = tpu.matmul %29, %31, %cst_17 {dimension_numbers = #tpu.dot_dimension_numbers<[1], [0], [0], [1], [0, 0, 1, 1], [], []>} : vector<8x4xbf16>, vector<4x256xbf16>, vector<8x256xf32> -> vector<8x256xf32>
    %c0_18 = arith.constant 0 : index
    %c0_19 = arith.constant 0 : index
    %33 = vector.load %arg9[%c0_18, %c0_19] : memref<8x1xf32, #tpu.memory_space<vmem>>, vector<8x1xf32>
    %34 = vector.broadcast %33 : vector<8x1xf32> to vector<8x256xf32>
    %35 = arith.addf %32, %34 : vector<8x256xf32>
    %c17_i32 = arith.constant 17 : i32
    %36 = tpu.dynamic_rotate %28 by %c17_i32 dim 1 : vector<8x256xf32>, i32 -> vector<8x256xf32>
    %c0_20 = arith.constant 0 : index
    %c0_21 = arith.constant 0 : index
    %c0_22 = arith.constant 0 : index
    %37 = vector.load %arg3[%c0_20, %c0_21, %c0_22] : memref<9x1x256xf32, #tpu.memory_space<vmem>>, vector<1x1x256xf32>
    %38 = vector.shape_cast %37 : vector<1x1x256xf32> to vector<1x256xf32>
    %39 = vector.broadcast %38 : vector<1x256xf32> to vector<8x256xf32>
    %40 = arith.mulf %36, %39 : vector<8x256xf32>
    %c0_23 = arith.constant 0 : index
    %c0_24 = arith.constant 0 : index
    %c0_25 = arith.constant 0 : index
    %41 = vector.load %arg7[%c0_23, %c0_24, %c0_25] : memref<9x8x8xbf16, #tpu.memory_space<vmem>>, vector<1x8x8xbf16>
    %42 = vector.shape_cast %41 : vector<1x8x8xbf16> to vector<8x8xbf16>
    %43 = arith.truncf %40 : vector<8x256xf32> to vector<8x256xbf16>
    %cst_26 = arith.constant dense<0.000000e+00> : vector<8x256xf32>
    %44 = tpu.matmul %42, %43, %cst_26 {dimension_numbers = #tpu.dot_dimension_numbers<[1], [0], [0], [1], [0, 0, 1, 1], [], []>} : vector<8x8xbf16>, vector<8x256xbf16>, vector<8x256xf32> -> vector<8x256xf32>
    %c16_i32 = arith.constant 16 : i32
    %45 = tpu.dynamic_rotate %28 by %c16_i32 dim 1 : vector<8x256xf32>, i32 -> vector<8x256xf32>
    %c1 = arith.constant 1 : index
    %c0_27 = arith.constant 0 : index
    %c0_28 = arith.constant 0 : index
    %46 = vector.load %arg3[%c1, %c0_27, %c0_28] : memref<9x1x256xf32, #tpu.memory_space<vmem>>, vector<1x1x256xf32>
    %47 = vector.shape_cast %46 : vector<1x1x256xf32> to vector<1x256xf32>
    %48 = vector.broadcast %47 : vector<1x256xf32> to vector<8x256xf32>
    %49 = arith.mulf %45, %48 : vector<8x256xf32>
    %c1_29 = arith.constant 1 : index
    %c0_30 = arith.constant 0 : index
    %c0_31 = arith.constant 0 : index
    %50 = vector.load %arg7[%c1_29, %c0_30, %c0_31] : memref<9x8x8xbf16, #tpu.memory_space<vmem>>, vector<1x8x8xbf16>
    %51 = vector.shape_cast %50 : vector<1x8x8xbf16> to vector<8x8xbf16>
    %52 = arith.truncf %49 : vector<8x256xf32> to vector<8x256xbf16>
    %cst_32 = arith.constant dense<0.000000e+00> : vector<8x256xf32>
    %53 = tpu.matmul %51, %52, %cst_32 {dimension_numbers = #tpu.dot_dimension_numbers<[1], [0], [0], [1], [0, 0, 1, 1], [], []>} : vector<8x8xbf16>, vector<8x256xbf16>, vector<8x256xf32> -> vector<8x256xf32>
    %54 = arith.addf %44, %53 : vector<8x256xf32>
    %c15_i32 = arith.constant 15 : i32
    %55 = tpu.dynamic_rotate %28 by %c15_i32 dim 1 : vector<8x256xf32>, i32 -> vector<8x256xf32>
    %c2 = arith.constant 2 : index
    %c0_33 = arith.constant 0 : index
    %c0_34 = arith.constant 0 : index
    %56 = vector.load %arg3[%c2, %c0_33, %c0_34] : memref<9x1x256xf32, #tpu.memory_space<vmem>>, vector<1x1x256xf32>
    %57 = vector.shape_cast %56 : vector<1x1x256xf32> to vector<1x256xf32>
    %58 = vector.broadcast %57 : vector<1x256xf32> to vector<8x256xf32>
    %59 = arith.mulf %55, %58 : vector<8x256xf32>
    %c2_35 = arith.constant 2 : index
    %c0_36 = arith.constant 0 : index
    %c0_37 = arith.constant 0 : index
    %60 = vector.load %arg7[%c2_35, %c0_36, %c0_37] : memref<9x8x8xbf16, #tpu.memory_space<vmem>>, vector<1x8x8xbf16>
    %61 = vector.shape_cast %60 : vector<1x8x8xbf16> to vector<8x8xbf16>
    %62 = arith.truncf %59 : vector<8x256xf32> to vector<8x256xbf16>
    %cst_38 = arith.constant dense<0.000000e+00> : vector<8x256xf32>
    %63 = tpu.matmul %61, %62, %cst_38 {dimension_numbers = #tpu.dot_dimension_numbers<[1], [0], [0], [1], [0, 0, 1, 1], [], []>} : vector<8x8xbf16>, vector<8x256xbf16>, vector<8x256xf32> -> vector<8x256xf32>
    %64 = arith.addf %54, %63 : vector<8x256xf32>
    %c1_i32 = arith.constant 1 : i32
    %65 = tpu.dynamic_rotate %28 by %c1_i32 dim 1 : vector<8x256xf32>, i32 -> vector<8x256xf32>
    %c3 = arith.constant 3 : index
    %c0_39 = arith.constant 0 : index
    %c0_40 = arith.constant 0 : index
    %66 = vector.load %arg3[%c3, %c0_39, %c0_40] : memref<9x1x256xf32, #tpu.memory_space<vmem>>, vector<1x1x256xf32>
    %67 = vector.shape_cast %66 : vector<1x1x256xf32> to vector<1x256xf32>
    %68 = vector.broadcast %67 : vector<1x256xf32> to vector<8x256xf32>
    %69 = arith.mulf %65, %68 : vector<8x256xf32>
    %c3_41 = arith.constant 3 : index
    %c0_42 = arith.constant 0 : index
    %c0_43 = arith.constant 0 : index
    %70 = vector.load %arg7[%c3_41, %c0_42, %c0_43] : memref<9x8x8xbf16, #tpu.memory_space<vmem>>, vector<1x8x8xbf16>
    %71 = vector.shape_cast %70 : vector<1x8x8xbf16> to vector<8x8xbf16>
    %72 = arith.truncf %69 : vector<8x256xf32> to vector<8x256xbf16>
    %cst_44 = arith.constant dense<0.000000e+00> : vector<8x256xf32>
    %73 = tpu.matmul %71, %72, %cst_44 {dimension_numbers = #tpu.dot_dimension_numbers<[1], [0], [0], [1], [0, 0, 1, 1], [], []>} : vector<8x8xbf16>, vector<8x256xbf16>, vector<8x256xf32> -> vector<8x256xf32>
    %74 = arith.addf %64, %73 : vector<8x256xf32>
    %c4 = arith.constant 4 : index
    %c0_45 = arith.constant 0 : index
    %c0_46 = arith.constant 0 : index
    %75 = vector.load %arg7[%c4, %c0_45, %c0_46] : memref<9x8x8xbf16, #tpu.memory_space<vmem>>, vector<1x8x8xbf16>
    %76 = vector.shape_cast %75 : vector<1x8x8xbf16> to vector<8x8xbf16>
    %77 = arith.truncf %28 : vector<8x256xf32> to vector<8x256xbf16>
    %cst_47 = arith.constant dense<0.000000e+00> : vector<8x256xf32>
    %78 = tpu.matmul %76, %77, %cst_47 {dimension_numbers = #tpu.dot_dimension_numbers<[1], [0], [0], [1], [0, 0, 1, 1], [], []>} : vector<8x8xbf16>, vector<8x256xbf16>, vector<8x256xf32> -> vector<8x256xf32>
    %79 = arith.addf %74, %78 : vector<8x256xf32>
    %c255_i32 = arith.constant 255 : i32
    %80 = tpu.dynamic_rotate %28 by %c255_i32 dim 1 : vector<8x256xf32>, i32 -> vector<8x256xf32>
    %c5 = arith.constant 5 : index
    %c0_48 = arith.constant 0 : index
    %c0_49 = arith.constant 0 : index
    %81 = vector.load %arg3[%c5, %c0_48, %c0_49] : memref<9x1x256xf32, #tpu.memory_space<vmem>>, vector<1x1x256xf32>
    %82 = vector.shape_cast %81 : vector<1x1x256xf32> to vector<1x256xf32>
    %83 = vector.broadcast %82 : vector<1x256xf32> to vector<8x256xf32>
    %84 = arith.mulf %80, %83 : vector<8x256xf32>
    %c5_50 = arith.constant 5 : index
    %c0_51 = arith.constant 0 : index
    %c0_52 = arith.constant 0 : index
    %85 = vector.load %arg7[%c5_50, %c0_51, %c0_52] : memref<9x8x8xbf16, #tpu.memory_space<vmem>>, vector<1x8x8xbf16>
    %86 = vector.shape_cast %85 : vector<1x8x8xbf16> to vector<8x8xbf16>
    %87 = arith.truncf %84 : vector<8x256xf32> to vector<8x256xbf16>
    %cst_53 = arith.constant dense<0.000000e+00> : vector<8x256xf32>
    %88 = tpu.matmul %86, %87, %cst_53 {dimension_numbers = #tpu.dot_dimension_numbers<[1], [0], [0], [1], [0, 0, 1, 1], [], []>} : vector<8x8xbf16>, vector<8x256xbf16>, vector<8x256xf32> -> vector<8x256xf32>
    %89 = arith.addf %79, %88 : vector<8x256xf32>
    %c241_i32 = arith.constant 241 : i32
    %90 = tpu.dynamic_rotate %28 by %c241_i32 dim 1 : vector<8x256xf32>, i32 -> vector<8x256xf32>
    %c6 = arith.constant 6 : index
    %c0_54 = arith.constant 0 : index
    %c0_55 = arith.constant 0 : index
    %91 = vector.load %arg3[%c6, %c0_54, %c0_55] : memref<9x1x256xf32, #tpu.memory_space<vmem>>, vector<1x1x256xf32>
    %92 = vector.shape_cast %91 : vector<1x1x256xf32> to vector<1x256xf32>
    %93 = vector.broadcast %92 : vector<1x256xf32> to vector<8x256xf32>
    %94 = arith.mulf %90, %93 : vector<8x256xf32>
    %c6_56 = arith.constant 6 : index
    %c0_57 = arith.constant 0 : index
    %c0_58 = arith.constant 0 : index
    %95 = vector.load %arg7[%c6_56, %c0_57, %c0_58] : memref<9x8x8xbf16, #tpu.memory_space<vmem>>, vector<1x8x8xbf16>
    %96 = vector.shape_cast %95 : vector<1x8x8xbf16> to vector<8x8xbf16>
    %97 = arith.truncf %94 : vector<8x256xf32> to vector<8x256xbf16>
    %cst_59 = arith.constant dense<0.000000e+00> : vector<8x256xf32>
    %98 = tpu.matmul %96, %97, %cst_59 {dimension_numbers = #tpu.dot_dimension_numbers<[1], [0], [0], [1], [0, 0, 1, 1], [], []>} : vector<8x8xbf16>, vector<8x256xbf16>, vector<8x256xf32> -> vector<8x256xf32>
    %99 = arith.addf %89, %98 : vector<8x256xf32>
    %c240_i32 = arith.constant 240 : i32
    %100 = tpu.dynamic_rotate %28 by %c240_i32 dim 1 : vector<8x256xf32>, i32 -> vector<8x256xf32>
    %c7 = arith.constant 7 : index
    %c0_60 = arith.constant 0 : index
    %c0_61 = arith.constant 0 : index
    %101 = vector.load %arg3[%c7, %c0_60, %c0_61] : memref<9x1x256xf32, #tpu.memory_space<vmem>>, vector<1x1x256xf32>
    %102 = vector.shape_cast %101 : vector<1x1x256xf32> to vector<1x256xf32>
    %103 = vector.broadcast %102 : vector<1x256xf32> to vector<8x256xf32>
    %104 = arith.mulf %100, %103 : vector<8x256xf32>
    %c7_62 = arith.constant 7 : index
    %c0_63 = arith.constant 0 : index
    %c0_64 = arith.constant 0 : index
    %105 = vector.load %arg7[%c7_62, %c0_63, %c0_64] : memref<9x8x8xbf16, #tpu.memory_space<vmem>>, vector<1x8x8xbf16>
    %106 = vector.shape_cast %105 : vector<1x8x8xbf16> to vector<8x8xbf16>
    %107 = arith.truncf %104 : vector<8x256xf32> to vector<8x256xbf16>
    %cst_65 = arith.constant dense<0.000000e+00> : vector<8x256xf32>
    %108 = tpu.matmul %106, %107, %cst_65 {dimension_numbers = #tpu.dot_dimension_numbers<[1], [0], [0], [1], [0, 0, 1, 1], [], []>} : vector<8x8xbf16>, vector<8x256xbf16>, vector<8x256xf32> -> vector<8x256xf32>
    %109 = arith.addf %99, %108 : vector<8x256xf32>
    %c239_i32 = arith.constant 239 : i32
    %110 = tpu.dynamic_rotate %28 by %c239_i32 dim 1 : vector<8x256xf32>, i32 -> vector<8x256xf32>
    %c8 = arith.constant 8 : index
    %c0_66 = arith.constant 0 : index
    %c0_67 = arith.constant 0 : index
    %111 = vector.load %arg3[%c8, %c0_66, %c0_67] : memref<9x1x256xf32, #tpu.memory_space<vmem>>, vector<1x1x256xf32>
    %112 = vector.shape_cast %111 : vector<1x1x256xf32> to vector<1x256xf32>
    %113 = vector.broadcast %112 : vector<1x256xf32> to vector<8x256xf32>
    %114 = arith.mulf %110, %113 : vector<8x256xf32>
    %c8_68 = arith.constant 8 : index
    %c0_69 = arith.constant 0 : index
    %c0_70 = arith.constant 0 : index
    %115 = vector.load %arg7[%c8_68, %c0_69, %c0_70] : memref<9x8x8xbf16, #tpu.memory_space<vmem>>, vector<1x8x8xbf16>
    %116 = vector.shape_cast %115 : vector<1x8x8xbf16> to vector<8x8xbf16>
    %117 = arith.truncf %114 : vector<8x256xf32> to vector<8x256xbf16>
    %cst_71 = arith.constant dense<0.000000e+00> : vector<8x256xf32>
    %118 = tpu.matmul %116, %117, %cst_71 {dimension_numbers = #tpu.dot_dimension_numbers<[1], [0], [0], [1], [0, 0, 1, 1], [], []>} : vector<8x8xbf16>, vector<8x256xbf16>, vector<8x256xf32> -> vector<8x256xf32>
    %119 = arith.addf %109, %118 : vector<8x256xf32>
    %120 = arith.addf %35, %119 : vector<8x256xf32>
    %c0_72 = arith.constant 0 : index
    %c0_73 = arith.constant 0 : index
    %121 = vector.load %arg10[%c0_72, %c0_73] : memref<8x256xf32, #tpu.memory_space<vmem>>, vector<8x256xf32>
    tpu.vector_store %arg10[%c0_72, %c0_73], %120 {strides = array<i32>} : memref<8x256xf32, #tpu.memory_space<vmem>>, vector<8x256xf32>,
    return
  }
  func.func @transform_0(%arg0: i32) -> (i32, i32) {
    %c0_i32 = arith.constant 0 : i32
    %c0_i32_0 = arith.constant 0 : i32
    return %c0_i32, %arg0 : i32, i32
  }
  func.func @transform_1(%arg0: i32) -> (i32, i32) {
    %c0_i32 = arith.constant 0 : i32
    %c0_i32_0 = arith.constant 0 : i32
    return %c0_i32, %arg0 : i32, i32
  }
  func.func @transform_2(%arg0: i32) -> (i32, i32, i32) {
    %c0_i32 = arith.constant 0 : i32
    %c0_i32_0 = arith.constant 0 : i32
    %c0_i32_1 = arith.constant 0 : i32
    %c0_i32_2 = arith.constant 0 : i32
    return %c0_i32, %c0_i32_0, %c0_i32_1 : i32, i32, i32
  }
  func.func @transform_3(%arg0: i32) -> (i32, i32, i32) {
    %c0_i32 = arith.constant 0 : i32
    %c0_i32_0 = arith.constant 0 : i32
    %c0_i32_1 = arith.constant 0 : i32
    %c0_i32_2 = arith.constant 0 : i32
    return %c0_i32, %c0_i32_0, %c0_i32_1 : i32, i32, i32
  }
  func.func @transform_4(%arg0: i32) -> (i32, i32) {
    %c0_i32 = arith.constant 0 : i32
    %c0_i32_0 = arith.constant 0 : i32
    %c0_i32_1 = arith.constant 0 : i32
    return %c0_i32, %c0_i32_0 : i32, i32
  }
  func.func @transform_5(%arg0: i32) -> (i32, i32) {
    %c0_i32 = arith.constant 0 : i32
    %c0_i32_0 = arith.constant 0 : i32
    %c0_i32_1 = arith.constant 0 : i32
    return %c0_i32, %c0_i32_0 : i32, i32
  }
  func.func @transform_6(%arg0: i32) -> (i32, i32, i32) {
    %c0_i32 = arith.constant 0 : i32
    %c0_i32_0 = arith.constant 0 : i32
    %c0_i32_1 = arith.constant 0 : i32
    %c0_i32_2 = arith.constant 0 : i32
    return %c0_i32, %c0_i32_0, %c0_i32_1 : i32, i32, i32
  }
  func.func @transform_7(%arg0: i32) -> (i32, i32) {
    %c0_i32 = arith.constant 0 : i32
    %c0_i32_0 = arith.constant 0 : i32
    %c0_i32_1 = arith.constant 0 : i32
    return %c0_i32, %c0_i32_0 : i32, i32
  }
  func.func @transform_8(%arg0: i32) -> (i32, i32) {
    %c0_i32 = arith.constant 0 : i32
    %c0_i32_0 = arith.constant 0 : i32
    %c0_i32_1 = arith.constant 0 : i32
    return %c0_i32, %c0_i32_0 : i32, i32
  }
  func.func @transform_9(%arg0: i32) -> (i32, i32) {
    %c0_i32 = arith.constant 0 : i32
    %c0_i32_0 = arith.constant 0 : i32
    return %c0_i32, %arg0 : i32, i32
  }
}

</mosaic_0001>

<llo_original>
// kernel: resnet_block_forward.3
$region0: #{resnet_block_forward.3}
  #allocation0 [shape = 'u32[]', space=smem, size = 0x4, offset = 0x4, fixed_abs, tag = 'smem constant byte address 0x4 - core index']
  #allocation1 [shape = 'u32[72,128]{1,0:T(1,128)}', space=vmem, size = 0x9000, scoped, tag = 'internal scratch']
  %s0 = inlined_call_operand.vmem [shape: f32[4,512], index: 0, kind: input, shape index: {}]
  %s1 = inlined_call_operand.vmem [shape: bf16[8,512], index: 1, kind: input, shape index: {}]
  %s2 = inlined_call_operand.vmem [shape: f32[9,1,256], index: 2, kind: input, shape index: {}]
  %s3 = inlined_call_operand.vmem [shape: f32[2,8,2], index: 3, kind: input, shape index: {}]
  %s4 = inlined_call_operand.vmem [shape: f32[8,1], index: 4, kind: input, shape index: {}]
  %s5 = inlined_call_operand.vmem [shape: f32[8,1], index: 5, kind: input, shape index: {}]
  %s6 = inlined_call_operand.vmem [shape: bf16[9,8,8], index: 6, kind: input, shape index: {}]
  %s7 = inlined_call_operand.vmem [shape: bf16[8,4], index: 7, kind: input, shape index: {}]
  %s8 = inlined_call_operand.vmem [shape: f32[8,1], index: 8, kind: input, shape index: {}]
  %s9 = inlined_call_operand.vmem [shape: f32[8,512], index: 9, kind: output, shape index: {}]
  %s10 = sld [smem:[#allocation0]]
  $region69: #{resnet_block_forward.3} parent=0
    _
  %s12 = ssub.s32 1, %s10
  %s13 = scalar_select 0, %s12, %s10
  loop: start=0, step=1, limit=4
  $region2: #{resnet_block_forward.3} parent=0 // loop_pre_header
    _
  $region3: #{resnet_block_forward.3} parent=0 // loop_header
    %s15 = sphi 0, %s19
    %p16 = scmp.ge.s32.totalorder %s15, 4
    %s25 = sphi 0, %s27
    %s28 = sphi 0, %s25
    %s29 = sphi 0, %s28
    %s45 = sphi 0, %s29
    %s51 = sphi 0, %s53
    %s54 = sphi 0, %s51
    %s55 = sphi 0, %s54
    %s71 = sphi 0, %s55
    %s75 = sphi 0, %s75
    %s77 = sphi 0, %s75
    %s78 = sphi 0, %s77
    %s92 = sphi 0, %s78
    %s96 = sphi 0, %s96
    %s98 = sphi 0, %s96
    %s99 = sphi 0, %s98
    %s113 = sphi 0, %s99
    %s117 = sphi 0, %s117
    %s119 = sphi 0, %s117
    %s120 = sphi 0, %s119
    %s134 = sphi 0, %s120
    %s138 = sphi 0, %s138
    %s140 = sphi 0, %s138
    %s141 = sphi 0, %s140
    %s155 = sphi 0, %s141
    %s159 = sphi 0, %s159
    %s161 = sphi 0, %s159
    %s162 = sphi 0, %s161
    %s176 = sphi 0, %s162
    %s180 = sphi 0, %s180
    %s182 = sphi 0, %s180
    %s183 = sphi 0, %s182
    %s197 = sphi 0, %s183
    %s201 = sphi 0, %s201
    %s203 = sphi 0, %s201
    %s204 = sphi 0, %s203
    %s218 = sphi 0, %s204
    %s224 = sphi 0, %s226
    %s227 = sphi 0, %s224
    %s228 = sphi 0, %s227
    %s244 = sphi 0, %s228
  $region4: #{resnet_block_forward.3} parent=0 // loop_header_branch
    %18 = sbr.rel (%p16) target = $region8
  $region5: #{resnet_block_forward.3} parent=0 // loop_body
    %s20 = ssub.s32 %s15, 1
    %s21 = ssub.s32 %s15, 2
    %s22 = sadd.s32 %s15, 1
    %s23 = ssub.s32 %s15, %s22
    %p24 = scmp.eq.s32.totalorder %s23, 0
    %s26 = sadd.s32 %s25, 1
    %s27 = scalar_select %p24, %s25, %s26
    %p30 = pneg %p24
    %p31 = scmp.eq.s32.totalorder %s15, 1
    %p32 = por %p30, %p31
    %p33 = scmp.ne.s32.totalorder %s25, %s28
    %p34 = scmp.eq.s32.totalorder %s15, 0
    %p35 = por %p33, %p34
    %p36 = scmp.ne.s32.totalorder %s25, %s28
    %p37 = scmp.eq.s32.totalorder %s20, 1
    %p38 = por %p36, %p37
    %p39 = scmp.ne.s32.totalorder %s28, %s29
    %p40 = scmp.eq.s32.totalorder %s20, 0
    %p41 = por %p39, %p40
    %p42 = scmp.ne.s32.totalorder %s28, %s29
    %p43 = scmp.eq.s32.totalorder %s21, 1
    %p44 = por %p42, %p43
    %p46 = scmp.ne.s32.totalorder %s29, %s45
    %p47 = scmp.eq.s32.totalorder %s21, 0
    %p48 = por %p46, %p47
    %s49 = ssub.s32 %s15, %s22
    %p50 = scmp.eq.s32.totalorder %s49, 0
    %s52 = sadd.s32 %s51, 1
    %s53 = scalar_select %p50, %s51, %s52
    %p56 = pneg %p50
    %p57 = scmp.eq.s32.totalorder %s15, 1
    %p58 = por %p56, %p57
    %p59 = scmp.ne.s32.totalorder %s51, %s54
    %p60 = scmp.eq.s32.totalorder %s15, 0
    %p61 = por %p59, %p60
    %p62 = scmp.ne.s32.totalorder %s51, %s54
    %p63 = scmp.eq.s32.totalorder %s20, 1
    %p64 = por %p62, %p63
    %p65 = scmp.ne.s32.totalorder %s54, %s55
    %p66 = scmp.eq.s32.totalorder %s20, 0
    %p67 = por %p65, %p66
    %p68 = scmp.ne.s32.totalorder %s54, %s55
    %p69 = scmp.eq.s32.totalorder %s21, 1
    %p70 = por %p68, %p69
    %p72 = scmp.ne.s32.totalorder %s55, %s71
    %p73 = scmp.eq.s32.totalorder %s21, 0
    %p74 = por %p72, %p73
    %s76 = sadd.s32 %s75, 1
    %p79 = scmp.eq.s32.totalorder %s15, 1
    %p80 = scmp.ne.s32.totalorder %s75, %s77
    %p81 = scmp.eq.s32.totalorder %s15, 0
    %p82 = por %p80, %p81
    %p83 = scmp.ne.s32.totalorder %s75, %s77
    %p84 = scmp.eq.s32.totalorder %s20, 1
    %p85 = por %p83, %p84
    %p86 = scmp.ne.s32.totalorder %s77, %s78
    %p87 = scmp.eq.s32.totalorder %s20, 0
    %p88 = por %p86, %p87
    %p89 = scmp.ne.s32.totalorder %s77, %s78
    %p90 = scmp.eq.s32.totalorder %s21, 1
    %p91 = por %p89, %p90
    %p93 = scmp.ne.s32.totalorder %s78, %s92
    %p94 = scmp.eq.s32.totalorder %s21, 0
    %p95 = por %p93, %p94
    %s97 = sadd.s32 %s96, 1
    %p100 = scmp.eq.s32.totalorder %s15, 1
    %p101 = scmp.ne.s32.totalorder %s96, %s98
    %p102 = scmp.eq.s32.totalorder %s15, 0
    %p103 = por %p101, %p102
    %p104 = scmp.ne.s32.totalorder %s96, %s98
    %p105 = scmp.eq.s32.totalorder %s20, 1
    %p106 = por %p104, %p105
    %p107 = scmp.ne.s32.totalorder %s98, %s99
    %p108 = scmp.eq.s32.totalorder %s20, 0
    %p109 = por %p107, %p108
    %p110 = scmp.ne.s32.totalorder %s98, %s99
    %p111 = scmp.eq.s32.totalorder %s21, 1
    %p112 = por %p110, %p111
    %p114 = scmp.ne.s32.totalorder %s99, %s113
    %p115 = scmp.eq.s32.totalorder %s21, 0
    %p116 = por %p114, %p115
    %s118 = sadd.s32 %s117, 1
    %p121 = scmp.eq.s32.totalorder %s15, 1
    %p122 = scmp.ne.s32.totalorder %s117, %s119
    %p123 = scmp.eq.s32.totalorder %s15, 0
    %p124 = por %p122, %p123
    %p125 = scmp.ne.s32.totalorder %s117, %s119
    %p126 = scmp.eq.s32.totalorder %s20, 1
    %p127 = por %p125, %p126
    %p128 = scmp.ne.s32.totalorder %s119, %s120
    %p129 = scmp.eq.s32.totalorder %s20, 0
    %p130 = por %p128, %p129
    %p131 = scmp.ne.s32.totalorder %s119, %s120
    %p132 = scmp.eq.s32.totalorder %s21, 1
    %p133 = por %p131, %p132
    %p135 = scmp.ne.s32.totalorder %s120, %s134
    %p136 = scmp.eq.s32.totalorder %s21, 0
    %p137 = por %p135, %p136
    %s139 = sadd.s32 %s138, 1
    %p142 = scmp.eq.s32.totalorder %s15, 1
    %p143 = scmp.ne.s32.totalorder %s138, %s140
    %p144 = scmp.eq.s32.totalorder %s15, 0
    %p145 = por %p143, %p144
    %p146 = scmp.ne.s32.totalorder %s138, %s140
    %p147 = scmp.eq.s32.totalorder %s20, 1
    %p148 = por %p146, %p147
    %p149 = scmp.ne.s32.totalorder %s140, %s141
    %p150 = scmp.eq.s32.totalorder %s20, 0
    %p151 = por %p149, %p150
    %p152 = scmp.ne.s32.totalorder %s140, %s141
    %p153 = scmp.eq.s32.totalorder %s21, 1
    %p154 = por %p152, %p153
    %p156 = scmp.ne.s32.totalorder %s141, %s155
    %p157 = scmp.eq.s32.totalorder %s21, 0
    %p158 = por %p156, %p157
    %s160 = sadd.s32 %s159, 1
    %p163 = scmp.eq.s32.totalorder %s15, 1
    %p164 = scmp.ne.s32.totalorder %s159, %s161
    %p165 = scmp.eq.s32.totalorder %s15, 0
    %p166 = por %p164, %p165
    %p167 = scmp.ne.s32.totalorder %s159, %s161
    %p168 = scmp.eq.s32.totalorder %s20, 1
    %p169 = por %p167, %p168
    %p170 = scmp.ne.s32.totalorder %s161, %s162
    %p171 = scmp.eq.s32.totalorder %s20, 0
    %p172 = por %p170, %p171
    %p173 = scmp.ne.s32.totalorder %s161, %s162
    %p174 = scmp.eq.s32.totalorder %s21, 1
    %p175 = por %p173, %p174
    %p177 = scmp.ne.s32.totalorder %s162, %s176
    %p178 = scmp.eq.s32.totalorder %s21, 0
    %p179 = por %p177, %p178
    %s181 = sadd.s32 %s180, 1
    %p184 = scmp.eq.s32.totalorder %s15, 1
    %p185 = scmp.ne.s32.totalorder %s180, %s182
    %p186 = scmp.eq.s32.totalorder %s15, 0
    %p187 = por %p185, %p186
    %p188 = scmp.ne.s32.totalorder %s180, %s182
    %p189 = scmp.eq.s32.totalorder %s20, 1
    %p190 = por %p188, %p189
    %p191 = scmp.ne.s32.totalorder %s182, %s183
    %p192 = scmp.eq.s32.totalorder %s20, 0
    %p193 = por %p191, %p192
    %p194 = scmp.ne.s32.totalorder %s182, %s183
    %p195 = scmp.eq.s32.totalorder %s21, 1
    %p196 = por %p194, %p195
    %p198 = scmp.ne.s32.totalorder %s183, %s197
    %p199 = scmp.eq.s32.totalorder %s21, 0
    %p200 = por %p198, %p199
    %s202 = sadd.s32 %s201, 1
    %p205 = scmp.eq.s32.totalorder %s15, 1
    %p206 = scmp.ne.s32.totalorder %s201, %s203
    %p207 = scmp.eq.s32.totalorder %s15, 0
    %p208 = por %p206, %p207
    %p209 = scmp.ne.s32.totalorder %s201, %s203
    %p210 = scmp.eq.s32.totalorder %s20, 1
    %p211 = por %p209, %p210
    %p212 = scmp.ne.s32.totalorder %s203, %s204
    %p213 = scmp.eq.s32.totalorder %s20, 0
    %p214 = por %p212, %p213
    %p215 = scmp.ne.s32.totalorder %s203, %s204
    %p216 = scmp.eq.s32.totalorder %s21, 1
    %p217 = por %p215, %p216
    %p219 = scmp.ne.s32.totalorder %s204, %s218
    %p220 = scmp.eq.s32.totalorder %s21, 0
    %p221 = por %p219, %p220
    %s222 = ssub.s32 %s15, %s22
    %p223 = scmp.eq.s32.totalorder %s222, 0
    %s225 = sadd.s32 %s224, 1
    %s226 = scalar_select %p223, %s224, %s225
    %p229 = pneg %p223
    %p230 = scmp.eq.s32.totalorder %s15, 1
    %p231 = por %p229, %p230
    %p232 = scmp.ne.s32.totalorder %s224, %s227
    %p233 = scmp.eq.s32.totalorder %s15, 0
    %p234 = por %p232, %p233
    %p235 = scmp.ne.s32.totalorder %s224, %s227
    %p236 = scmp.eq.s32.totalorder %s20, 1
    %p237 = por %p235, %p236
    %p238 = scmp.ne.s32.totalorder %s227, %s228
    %p239 = scmp.eq.s32.totalorder %s20, 0
    %p240 = por %p238, %p239
    %p241 = scmp.ne.s32.totalorder %s227, %s228
    %p242 = scmp.eq.s32.totalorder %s21, 1
    %p243 = por %p241, %p242
    %p245 = scmp.ne.s32.totalorder %s228, %s244
    %p246 = scmp.eq.s32.totalorder %s21, 0
    %p247 = por %p245, %p246
    %p248 = scmp.le.s32.totalorder 1, %s15
    %p249 = scmp.lt.s32.totalorder %s15, 3
    %p250 = pnand %p248, %p249
    %p251 = pneg %p250
    // Predicated region
    $region9: #{resnet_block_forward.3} parent=5 // pred_check
      _
    $region10: #{resnet_block_forward.3} parent=5 // pred_check_branch
      %253 = sbr.rel (%p250) target = $region12
    $region11: #{resnet_block_forward.3} parent=5 // pred_region
      %s254 = ssub.s32 %s15, 1
      // Predicated region
      $region13: #{resnet_block_forward.3} parent=11 // pred_check
        %p255 = pneg %p88
      $region14: #{resnet_block_forward.3} parent=11 // pred_check_branch
        %257 = sbr.rel (%p255) target = $region16
      $region15: #{resnet_block_forward.3} parent=11 // pred_region
        _
      $region16: #{resnet_block_forward.3} parent=11 // pred_fallthru
        _
      // Predicated region
      $region17: #{resnet_block_forward.3} parent=11 // pred_check
        %p258 = pneg %p109
      $region18: #{resnet_block_forward.3} parent=11 // pred_check_branch
        %260 = sbr.rel (%p258) target = $region20
      $region19: #{resnet_block_forward.3} parent=11 // pred_region
        _
      $region20: #{resnet_block_forward.3} parent=11 // pred_fallthru
        _
      // Predicated region
      $region21: #{resnet_block_forward.3} parent=11 // pred_check
        %p261 = pneg %p130
      $region22: #{resnet_block_forward.3} parent=11 // pred_check_branch
        %263 = sbr.rel (%p261) target = $region24
      $region23: #{resnet_block_forward.3} parent=11 // pred_region
        _
      $region24: #{resnet_block_forward.3} parent=11 // pred_fallthru
        _
      // Predicated region
      $region25: #{resnet_block_forward.3} parent=11 // pred_check
        %p264 = pneg %p151
      $region26: #{resnet_block_forward.3} parent=11 // pred_check_branch
        %266 = sbr.rel (%p264) target = $region28
      $region27: #{resnet_block_forward.3} parent=11 // pred_region
        _
      $region28: #{resnet_block_forward.3} parent=11 // pred_fallthru
        _
      // Predicated region
      $region29: #{resnet_block_forward.3} parent=11 // pred_check
        %p267 = pneg %p172
      $region30: #{resnet_block_forward.3} parent=11 // pred_check_branch
        %269 = sbr.rel (%p267) target = $region32
      $region31: #{resnet_block_forward.3} parent=11 // pred_region
        _
      $region32: #{resnet_block_forward.3} parent=11 // pred_fallthru
        _
      // Predicated region
      $region33: #{resnet_block_forward.3} parent=11 // pred_check
        %p270 = pneg %p193
      $region34: #{resnet_block_forward.3} parent=11 // pred_check_branch
        %272 = sbr.rel (%p270) target = $region36
      $region35: #{resnet_block_forward.3} parent=11 // pred_region
        _
      $region36: #{resnet_block_forward.3} parent=11 // pred_fallthru
        _
      // Predicated region
      $region37: #{resnet_block_forward.3} parent=11 // pred_check
        %p273 = pneg %p214
      $region38: #{resnet_block_forward.3} parent=11 // pred_check_branch
        %275 = sbr.rel (%p273) target = $region40
      $region39: #{resnet_block_forward.3} parent=11 // pred_region
        _
      $region40: #{resnet_block_forward.3} parent=11 // pred_fallthru
        _
    $region12: #{resnet_block_forward.3} parent=5 // pred_fallthru
      _
    %p276 = scmp.lt.s32.totalorder %s15, 2
    // Predicated region
    $region41: #{resnet_block_forward.3} parent=5 // pred_check
      %p277 = pneg %p276
    $region42: #{resnet_block_forward.3} parent=5 // pred_check_branch
      %279 = sbr.rel (%p277) target = $region44
    $region43: #{resnet_block_forward.3} parent=5 // pred_region
      // Predicated region
      $region45: #{resnet_block_forward.3} parent=43 // pred_check
        %p280 = pneg %p35
      $region46: #{resnet_block_forward.3} parent=43 // pred_check_branch
        %282 = sbr.rel (%p280) target = $region48
      $region47: #{resnet_block_forward.3} parent=43 // pred_region
        %s283 = smul.u32 2, %s15
        %p284 = scmp.lt.s32.totalorder %s283, 3
        %s285 = scalar_select %p284, %s283, 3
        %s286 = smul.addr %s285, 4
        %s287 = scalar_lea.vmem %s0, %s286
        %s288 = smul.u32 2, %s15
      $region48: #{resnet_block_forward.3} parent=43 // pred_fallthru
        _
      // Predicated region
      $region49: #{resnet_block_forward.3} parent=43 // pred_check
        %p289 = pneg %p61
      $region50: #{resnet_block_forward.3} parent=43 // pred_check_branch
        %291 = sbr.rel (%p289) target = $region52
      $region51: #{resnet_block_forward.3} parent=43 // pred_region
        %s292 = smul.u32 2, %s15
        %p293 = scmp.lt.s32.totalorder %s292, 3
        %s294 = scalar_select %p293, %s292, 3
        %s295 = smul.addr %s294, 4
        %s296 = scalar_lea.vmem %s1, %s295
        %s297 = smul.u32 2, %s15
      $region52: #{resnet_block_forward.3} parent=43 // pred_fallthru
        _
    $region44: #{resnet_block_forward.3} parent=5 // pred_fallthru
      _
    %p298 = scmp.le.s32.totalorder 1, %s15
    %p299 = scmp.lt.s32.totalorder %s15, 3
    %p300 = pnand %p298, %p299
    %p301 = pneg %p300
    // Predicated region
    $region53: #{resnet_block_forward.3} parent=5 // pred_check
      _
    $region54: #{resnet_block_forward.3} parent=5 // pred_check_branch
      %303 = sbr.rel (%p300) target = $region56
    $region55: #{resnet_block_forward.3} parent=5 // pred_region
      %s304 = ssub.s32 %s15, 1
      %s305 = smul.u32 2, %s20
      %p306 = scmp.lt.s32.totalorder %s305, 3
      %s307 = scalar_select %p306, %s305, 3
      %s308 = smul.addr %s307, 4
      %s309 = scalar_lea.vmem %s0, %s308
      %p310 = pneg %p41
      %p311 = pneg %p38
      %s312 = smul.u32 2, %s20
      %p313 = scmp.lt.s32.totalorder %s312, 3
      %s314 = scalar_select %p313, %s312, 3
      %s315 = smul.addr %s314, 4
      %s316 = scalar_lea.vmem %s1, %s315
      %p317 = pneg %p67
      %p318 = pneg %p64
      %p319 = pneg %p88
      %p320 = pneg %p85
      %p321 = pneg %p109
      %p322 = pneg %p106
      %p323 = pneg %p130
      %p324 = pneg %p127
      %p325 = pneg %p151
      %p326 = pneg %p148
      %p327 = pneg %p172
      %p328 = pneg %p169
      %p329 = pneg %p193
      %p330 = pneg %p190
      %p331 = pneg %p214
      %p332 = pneg %p211
      %p333 = pneg %p240
      %p334 = pneg %p237
      %s335 = smul.u32 2, %s20
      %p336 = scmp.lt.s32.totalorder %s335, 3
      %s337 = scalar_select %p336, %s335, 3
      %s338 = smul.addr %s337, 8
      %s339 = scalar_lea.vmem %s9, %s338
      %s340 = smul.u32 2, %s20
      %p341 = scmp.lt.s32.totalorder %s340, 3
      %s342 = scalar_select %p341, %s340, 3
      %s343 = smul.addr %s342, 4
      %s344 = scalar_lea.vmem %s0, %s343
      %s345 = smul.u32 2, %s20
      %s346 = smul.u32 2, %s20
      %p347 = scmp.lt.s32.totalorder %s346, 3
      %s348 = scalar_select %p347, %s346, 3
      %s349 = smul.addr %s348, 4
      %s350 = scalar_lea.vmem %s1, %s349
      %s351 = smul.u32 2, %s20
      %s352 = smul.u32 2, %s20
      %p353 = scmp.lt.s32.totalorder %s352, 3
      %s354 = scalar_select %p353, %s352, 3
      %s355 = smul.addr %s354, 8
      %s356 = scalar_lea.vmem %s9, %s355
      %s357 = smul.u32 2, %s20
      %v359 = vld [vmem:[%s3] sm:$0xff]
      %v360 = vld [vmem:[%s3 + $0x8] sm:$0xff]
      %vm361 = vcmask 15360
      %v362 = vsel %vm361, %v359, 0.0
      %v363 = vsel %vm361, %v360, 0.0
      %v364 = vadd.f32 %v362, %v363
      %v365 = vmul.f32 %v364, 0.001953125
      %v366 = vmul.f32 %v365, %v365
      %368 = vrot.lane.b32.xlu0 %v366, 1
      %v369 = vpop.permute.xlu0 %368
      %v371 = vsub.f32 %v365, %v369
      %v372 = vmax.f32 %v371, 0.0
      %v373 = vld [vmem:[%s4] sm:$0xff]
      %v374 = vadd.f32 %v372, 1e-05
      %v375 = vrsqrt.pop %v374
      %v376 = vmul.f32 %v375, %v374
      %v377 = vmul.f32 %v376, %v375
      %v378 = vmul.f32 0.5, %v377
      %v379 = vsub.f32 1.5, %v378
      %v380 = vmul.f32 %v375, %v379
      %vm381 = vweird.f32 %v374
      %vm382 = vweird.f32 %v375
      %vm383 = vmor %vm381, %vm382
      %v384 = vsel %vm383, %v375, %v380
      %386 = vrot.lane.b32.xlu0 %v384, 127
      %v387 = vpop.permute.xlu0 %386
      %v389 = vmul.f32 %v373, %v387
      %v390 = vld [vmem:[%s5] sm:$0xff]
      %v391 = vmul.f32 %v365, %v389
      %v392 = vsub.f32 %v390, %v391
      %v393 = vld [vmem:[%s350] sm:$0xff]
      %v394 = vunpack.c.l.bf16 %v393
      %v395 = vunpack.c.h.bf16 %v393
      %397 = vset.pattern.permute.xlu0 0
      %398 = vperm.xlu0 %397, %v389
      %v399 = vpop.permute.xlu0 %398
      %v401 = vmul.f32 %v394, %v399
      %v402 = vmul.f32 %v395, %v399
      %404 = vset.pattern.permute.xlu0 0
      %405 = vperm.xlu0 %404, %v392
      %v406 = vpop.permute.xlu0 %405
      %v408 = vadd.f32 %v401, %v406
      %v409 = vadd.f32 %v402, %v406
      %v410 = vmul.f32 %v408, 0.01
      %v411 = vmul.f32 %v409, 0.01
      %v412 = vmax.f32 %v408, %v410
      %v413 = vmax.f32 %v409, %v411
      %v414 = vld [vmem:[%s7] sm:$0xf]
      %v415 = vld [vmem:[%s344] sm:$0xff]
      %417 = vst [vmem:[#allocation1] ss:$2 sm:$0xff] %v415
      %v418 = vld.sshfl [vmem:[#allocation1] sm:$0xff pattern:$0x75316420]
      %v419 = vld.sshfl [vmem:[#allocation1 + $0x8] sm:$0xff pattern:$0x75316420]
      %v422 = vpack.c.bf16 %v418, %v418
      %v423 = vpack.c.bf16 %v419, %v419
      %v424 = vld [vmem:[%s8] sm:$0xff]
      %426 = vset.pattern.permute.xlu0 0
      %427 = vperm.xlu0 %426, %v424
      %v428 = vpop.permute.xlu0 %427
      %vm430 = vcmask 31744
      %v432 = vsel %vm430, %v414, 0
      %vm434 = vcmask 1041408
      %v436 = vsel %vm434, %v422, 0
      %v439 = vsel %vm434, %v423, 0
      %441 = vmatpush.bf16.msra.mxu0 0
      %442 = vmatpush.bf16.msra.mxu0 0
      %443 = vmatpush.bf16.msra.mxu0 0
      %444 = vmatpush.bf16.msra.mxu0 0
      %445 = vmatpush.bf16.msra.mxu0 0
      %446 = vmatpush.bf16.msra.mxu0 0
      %447 = vmatpush.bf16.msra.mxu0 0
      %448 = vmatpush.bf16.msra.mxu0 %v436
      %449 = vmatmul.bf16.gmra.mxu0 %v432
      %v450 = vpop.f32.mrf.mxu0
      %v451 = vadd.f32 %v428, %v450
      %v452 = vpop.f32.mrf.mxu0
      %453 = vdwg.mxu0
      %454 = vmatpush.bf16.msra.mxu0 0
      %455 = vmatpush.bf16.msra.mxu0 0
      %456 = vmatpush.bf16.msra.mxu0 0
      %457 = vmatpush.bf16.msra.mxu0 0
      %458 = vmatpush.bf16.msra.mxu0 0
      %459 = vmatpush.bf16.msra.mxu0 0
      %460 = vmatpush.bf16.msra.mxu0 0
      %461 = vmatpush.bf16.msra.mxu0 %v439
      %462 = vmatmul.bf16.gmra.mxu0 %v432
      %v463 = vpop.f32.mrf.mxu0
      %v464 = vadd.f32 %v428, %v463
      %v465 = vpop.f32.mrf.mxu0
      %466 = vdwg.mxu0
      %467 = vrot.lane.b32.xlu0 %v412, 17
      %v468 = vpop.permute.xlu0 %467
      %469 = vrot.lane.b32.xlu0 %v413, 17
      %v470 = vpop.permute.xlu0 %469
      %v471 = vlaneseq
      %v472 = vand.u32 %v471, 127
      %vm473 = vcmp.lt.s32.totalorder %v472, 17
      %v474 = vsel %vm473, %v468, %v470
      %v475 = vsel %vm473, %v470, %v468
      %v476 = vld [vmem:[%s2] sm:$0x3]
      %v478 = vperm.slane %v476, 0
      %v479 = vperm.slane %v476, 1
      %v482 = vmul.f32 %v475, %v478
      %v483 = vmul.f32 %v474, %v479
      %v484 = vld [vmem:[%s6] sm:$0xf]
      %v485 = vpack.c.bf16 %v482, %v482
      %v486 = vpack.c.bf16 %v483, %v483
      %487 = vrot.lane.b32.xlu0 %v412, 16
      %v488 = vpop.permute.xlu0 %487
      %489 = vrot.lane.b32.xlu0 %v413, 16
      %v490 = vpop.permute.xlu0 %489
      %vm491 = vcmp.lt.s32.totalorder %v472, 16
      %v492 = vsel %vm491, %v488, %v490
      %v493 = vsel %vm491, %v490, %v488
      %s494 = scalar_lea.vmem %s2, 2
      %v495 = vld [vmem:[%s494] sm:$0x3]
      %v497 = vperm.slane %v495, 0
      %v498 = vperm.slane %v495, 1
      %v501 = vmul.f32 %v493, %v497
      %v502 = vmul.f32 %v492, %v498
      %s503 = scalar_lea.vmem %s6, 4
      %v504 = vld [vmem:[%s503] sm:$0xf]
      %v505 = vpack.c.bf16 %v501, %v501
      %v506 = vpack.c.bf16 %v502, %v502
      %vm507 = vcmask 64512
      %v509 = vsel %vm507, %v504, 0
      %vm511 = vcmask 1043456
      %v513 = vsel %vm511, %v505, 0
      %v516 = vsel %vm511, %v506, 0
      %518 = vmatpush.bf16.msra.mxu0 0
      %519 = vmatpush.bf16.msra.mxu0 0
      %520 = vmatpush.bf16.msra.mxu0 0
      %521 = vmatpush.bf16.msra.mxu0 0
      %522 = vmatpush.bf16.msra.mxu0 0
      %523 = vmatpush.bf16.msra.mxu0 0
      %524 = vmatpush.bf16.msra.mxu0 0
      %525 = vmatpush.bf16.msra.mxu0 %v513
      %526 = vmatmul.bf16.gmra.mxu0 %v509
      %v527 = vpop.f32.mrf.mxu0
      %v528 = vadd.f32 0.0, %v527
      %v529 = vpop.f32.mrf.mxu0
      %530 = vdwg.mxu0
      %531 = vmatpush.bf16.msra.mxu0 0
      %532 = vmatpush.bf16.msra.mxu0 0
      %533 = vmatpush.bf16.msra.mxu0 0
      %534 = vmatpush.bf16.msra.mxu0 0
      %535 = vmatpush.bf16.msra.mxu0 0
      %536 = vmatpush.bf16.msra.mxu0 0
      %537 = vmatpush.bf16.msra.mxu0 0
      %538 = vmatpush.bf16.msra.mxu0 %v516
      %539 = vmatmul.bf16.gmra.mxu0 %v509
      %v540 = vpop.f32.mrf.mxu0
      %v541 = vadd.f32 0.0, %v540
      %v542 = vpop.f32.mrf.mxu0
      %543 = vdwg.mxu0
      %v545 = vsel %vm507, %v484, 0
      %v548 = vsel %vm511, %v485, 0
      %v551 = vsel %vm511, %v486, 0
      %553 = vmatpush.bf16.msra.mxu0 0
      %554 = vmatpush.bf16.msra.mxu0 0
      %555 = vmatpush.bf16.msra.mxu0 0
      %556 = vmatpush.bf16.msra.mxu0 0
      %557 = vmatpush.bf16.msra.mxu0 0
      %558 = vmatpush.bf16.msra.mxu0 0
      %559 = vmatpush.bf16.msra.mxu0 0
      %560 = vmatpush.bf16.msra.mxu0 %v548
      %561 = vmatmul.bf16.gmra.mxu0 %v545
      %v562 = vpop.f32.mrf.mxu0
      %v563 = vadd.f32 %v528, %v562
      %v564 = vpop.f32.mrf.mxu0
      %565 = vdwg.mxu0
      %566 = vmatpush.bf16.msra.mxu0 0
      %567 = vmatpush.bf16.msra.mxu0 0
      %568 = vmatpush.bf16.msra.mxu0 0
      %569 = vmatpush.bf16.msra.mxu0 0
      %570 = vmatpush.bf16.msra.mxu0 0
      %571 = vmatpush.bf16.msra.mxu0 0
      %572 = vmatpush.bf16.msra.mxu0 0
      %573 = vmatpush.bf16.msra.mxu0 %v551
      %574 = vmatmul.bf16.gmra.mxu0 %v545
      %v575 = vpop.f32.mrf.mxu0
      %v576 = vadd.f32 %v541, %v575
      %v577 = vpop.f32.mrf.mxu0
      %578 = vdwg.mxu0
      %579 = vrot.lane.b32.xlu0 %v412, 15
      %v580 = vpop.permute.xlu0 %579
      %581 = vrot.lane.b32.xlu0 %v413, 15
      %v582 = vpop.permute.xlu0 %581
      %vm583 = vcmp.lt.s32.totalorder %v472, 15
      %v584 = vsel %vm583, %v580, %v582
      %v585 = vsel %vm583, %v582, %v580
      %s586 = scalar_lea.vmem %s2, 4
      %v587 = vld [vmem:[%s586] sm:$0x3]
      %v589 = vperm.slane %v587, 0
      %v590 = vperm.slane %v587, 1
      %v593 = vmul.f32 %v585, %v589
      %v594 = vmul.f32 %v584, %v590
      %s595 = scalar_lea.vmem %s6, 8
      %v596 = vld [vmem:[%s595] sm:$0xf]
      %v597 = vpack.c.bf16 %v593, %v593
      %v598 = vpack.c.bf16 %v594, %v594
      %v600 = vsel %vm507, %v596, 0
      %v603 = vsel %vm511, %v597, 0
      %v606 = vsel %vm511, %v598, 0
      %608 = vmatpush.bf16.msra.mxu0 0
      %609 = vmatpush.bf16.msra.mxu0 0
      %610 = vmatpush.bf16.msra.mxu0 0
      %611 = vmatpush.bf16.msra.mxu0 0
      %612 = vmatpush.bf16.msra.mxu0 0
      %613 = vmatpush.bf16.msra.mxu0 0
      %614 = vmatpush.bf16.msra.mxu0 0
      %615 = vmatpush.bf16.msra.mxu0 %v603
      %616 = vmatmul.bf16.gmra.mxu0 %v600
      %v617 = vpop.f32.mrf.mxu0
      %v618 = vadd.f32 0.0, %v617
      %v619 = vpop.f32.mrf.mxu0
      %620 = vdwg.mxu0
      %621 = vmatpush.bf16.msra.mxu0 0
      %622 = vmatpush.bf16.msra.mxu0 0
      %623 = vmatpush.bf16.msra.mxu0 0
      %624 = vmatpush.bf16.msra.mxu0 0
      %625 = vmatpush.bf16.msra.mxu0 0
      %626 = vmatpush.bf16.msra.mxu0 0
      %627 = vmatpush.bf16.msra.mxu0 0
      %628 = vmatpush.bf16.msra.mxu0 %v606
      %629 = vmatmul.bf16.gmra.mxu0 %v600
      %v630 = vpop.f32.mrf.mxu0
      %v631 = vadd.f32 0.0, %v630
      %v632 = vpop.f32.mrf.mxu0
      %633 = vdwg.mxu0
      %v634 = vadd.f32 %v563, %v618
      %v635 = vadd.f32 %v576, %v631
      %636 = vrot.lane.b32.xlu0 %v412, 1
      %v637 = vpop.permute.xlu0 %636
      %638 = vrot.lane.b32.xlu0 %v413, 1
      %v639 = vpop.permute.xlu0 %638
      %vm640 = vcmp.lt.s32.totalorder %v472, 1
      %v641 = vsel %vm640, %v637, %v639
      %v642 = vsel %vm640, %v639, %v637
      %s643 = scalar_lea.vmem %s2, 6
      %v644 = vld [vmem:[%s643] sm:$0x3]
      %v646 = vperm.slane %v644, 0
      %v647 = vperm.slane %v644, 1
      %v650 = vmul.f32 %v642, %v646
      %v651 = vmul.f32 %v641, %v647
      %s652 = scalar_lea.vmem %s6, 12
      %v653 = vld [vmem:[%s652] sm:$0xf]
      %v654 = vpack.c.bf16 %v650, %v650
      %v655 = vpack.c.bf16 %v651, %v651
      %v657 = vsel %vm507, %v653, 0
      %v660 = vsel %vm511, %v654, 0
      %v663 = vsel %vm511, %v655, 0
      %665 = vmatpush.bf16.msra.mxu0 0
      %666 = vmatpush.bf16.msra.mxu0 0
      %667 = vmatpush.bf16.msra.mxu0 0
      %668 = vmatpush.bf16.msra.mxu0 0
      %669 = vmatpush.bf16.msra.mxu0 0
      %670 = vmatpush.bf16.msra.mxu0 0
      %671 = vmatpush.bf16.msra.mxu0 0
      %672 = vmatpush.bf16.msra.mxu0 %v660
      %673 = vmatmul.bf16.gmra.mxu0 %v657
      %v674 = vpop.f32.mrf.mxu0
      %v675 = vadd.f32 0.0, %v674
      %v676 = vpop.f32.mrf.mxu0
      %677 = vdwg.mxu0
      %678 = vmatpush.bf16.msra.mxu0 0
      %679 = vmatpush.bf16.msra.mxu0 0
      %680 = vmatpush.bf16.msra.mxu0 0
      %681 = vmatpush.bf16.msra.mxu0 0
      %682 = vmatpush.bf16.msra.mxu0 0
      %683 = vmatpush.bf16.msra.mxu0 0
      %684 = vmatpush.bf16.msra.mxu0 0
      %685 = vmatpush.bf16.msra.mxu0 %v663
      %686 = vmatmul.bf16.gmra.mxu0 %v657
      %v687 = vpop.f32.mrf.mxu0
      %v688 = vadd.f32 0.0, %v687
      %v689 = vpop.f32.mrf.mxu0
      %690 = vdwg.mxu0
      %v691 = vadd.f32 %v634, %v675
      %v692 = vadd.f32 %v635, %v688
      %s693 = scalar_lea.vmem %s6, 16
      %v694 = vld [vmem:[%s693] sm:$0xf]
      %v695 = vpack.c.bf16 %v412, %v412
      %v696 = vpack.c.bf16 %v413, %v413
      %v698 = vsel %vm507, %v694, 0
      %v701 = vsel %vm511, %v695, 0
      %v704 = vsel %vm511, %v696, 0
      %706 = vmatpush.bf16.msra.mxu0 0
      %707 = vmatpush.bf16.msra.mxu0 0
      %708 = vmatpush.bf16.msra.mxu0 0
      %709 = vmatpush.bf16.msra.mxu0 0
      %710 = vmatpush.bf16.msra.mxu0 0
      %711 = vmatpush.bf16.msra.mxu0 0
      %712 = vmatpush.bf16.msra.mxu0 0
      %713 = vmatpush.bf16.msra.mxu0 %v701
      %714 = vmatmul.bf16.gmra.mxu0 %v698
      %v715 = vpop.f32.mrf.mxu0
      %v716 = vadd.f32 0.0, %v715
      %v717 = vpop.f32.mrf.mxu0
      %718 = vdwg.mxu0
      %719 = vmatpush.bf16.msra.mxu0 0
      %720 = vmatpush.bf16.msra.mxu0 0
      %721 = vmatpush.bf16.msra.mxu0 0
      %722 = vmatpush.bf16.msra.mxu0 0
      %723 = vmatpush.bf16.msra.mxu0 0
      %724 = vmatpush.bf16.msra.mxu0 0
      %725 = vmatpush.bf16.msra.mxu0 0
      %726 = vmatpush.bf16.msra.mxu0 %v704
      %727 = vmatmul.bf16.gmra.mxu0 %v698
      %v728 = vpop.f32.mrf.mxu0
      %v729 = vadd.f32 0.0, %v728
      %v730 = vpop.f32.mrf.mxu0
      %731 = vdwg.mxu0
      %v732 = vadd.f32 %v691, %v716
      %v733 = vadd.f32 %v692, %v729
      %734 = vrot.lane.b32.xlu0 %v412, 127
      %v735 = vpop.permute.xlu0 %734
      %736 = vrot.lane.b32.xlu0 %v413, 127
      %v737 = vpop.permute.xlu0 %736
      %vm738 = vcmp.lt.s32.totalorder %v472, 127
      %v739 = vsel %vm738, %v735, %v737
      %v740 = vsel %vm738, %v737, %v735
      %s741 = scalar_lea.vmem %s2, 10
      %v742 = vld [vmem:[%s741] sm:$0x3]
      %v744 = vperm.slane %v742, 0
      %v745 = vperm.slane %v742, 1
      %v748 = vmul.f32 %v739, %v744
      %v749 = vmul.f32 %v740, %v745
      %s750 = scalar_lea.vmem %s6, 20
      %v751 = vld [vmem:[%s750] sm:$0xf]
      %v752 = vpack.c.bf16 %v748, %v748
      %v753 = vpack.c.bf16 %v749, %v749
      %v755 = vsel %vm507, %v751, 0
      %v758 = vsel %vm511, %v752, 0
      %v761 = vsel %vm511, %v753, 0
      %763 = vmatpush.bf16.msra.mxu0 0
      %764 = vmatpush.bf16.msra.mxu0 0
      %765 = vmatpush.bf16.msra.mxu0 0
      %766 = vmatpush.bf16.msra.mxu0 0
      %767 = vmatpush.bf16.msra.mxu0 0
      %768 = vmatpush.bf16.msra.mxu0 0
      %769 = vmatpush.bf16.msra.mxu0 0
      %770 = vmatpush.bf16.msra.mxu0 %v758
      %771 = vmatmul.bf16.gmra.mxu0 %v755
      %v772 = vpop.f32.mrf.mxu0
      %v773 = vadd.f32 0.0, %v772
      %v774 = vpop.f32.mrf.mxu0
      %775 = vdwg.mxu0
      %776 = vmatpush.bf16.msra.mxu0 0
      %777 = vmatpush.bf16.msra.mxu0 0
      %778 = vmatpush.bf16.msra.mxu0 0
      %779 = vmatpush.bf16.msra.mxu0 0
      %780 = vmatpush.bf16.msra.mxu0 0
      %781 = vmatpush.bf16.msra.mxu0 0
      %782 = vmatpush.bf16.msra.mxu0 0
      %783 = vmatpush.bf16.msra.mxu0 %v761
      %784 = vmatmul.bf16.gmra.mxu0 %v755
      %v785 = vpop.f32.mrf.mxu0
      %v786 = vadd.f32 0.0, %v785
      %v787 = vpop.f32.mrf.mxu0
      %788 = vdwg.mxu0
      %v789 = vadd.f32 %v732, %v773
      %v790 = vadd.f32 %v733, %v786
      %791 = vrot.lane.b32.xlu0 %v412, 113
      %v792 = vpop.permute.xlu0 %791
      %793 = vrot.lane.b32.xlu0 %v413, 113
      %v794 = vpop.permute.xlu0 %793
      %vm795 = vcmp.lt.s32.totalorder %v472, 113
      %v796 = vsel %vm795, %v792, %v794
      %v797 = vsel %vm795, %v794, %v792
      %s798 = scalar_lea.vmem %s2, 12
      %v799 = vld [vmem:[%s798] sm:$0x3]
      %v801 = vperm.slane %v799, 0
      %v802 = vperm.slane %v799, 1
      %v805 = vmul.f32 %v796, %v801
      %v806 = vmul.f32 %v797, %v802
      %s807 = scalar_lea.vmem %s6, 24
      %v808 = vld [vmem:[%s807] sm:$0xf]
      %v809 = vpack.c.bf16 %v805, %v805
      %v810 = vpack.c.bf16 %v806, %v806
      %v812 = vsel %vm507, %v808, 0
      %v815 = vsel %vm511, %v809, 0
      %v818 = vsel %vm511, %v810, 0
      %820 = vmatpush.bf16.msra.mxu0 0
      %821 = vmatpush.bf16.msra.mxu0 0
      %822 = vmatpush.bf16.msra.mxu0 0
      %823 = vmatpush.bf16.msra.mxu0 0
      %824 = vmatpush.bf16.msra.mxu0 0
      %825 = vmatpush.bf16.msra.mxu0 0
      %826 = vmatpush.bf16.msra.mxu0 0
      %827 = vmatpush.bf16.msra.mxu0 %v815
      %828 = vmatmul.bf16.gmra.mxu0 %v812
      %v829 = vpop.f32.mrf.mxu0
      %v830 = vadd.f32 0.0, %v829
      %v831 = vpop.f32.mrf.mxu0
      %832 = vdwg.mxu0
      %833 = vmatpush.bf16.msra.mxu0 0
      %834 = vmatpush.bf16.msra.mxu0 0
      %835 = vmatpush.bf16.msra.mxu0 0
      %836 = vmatpush.bf16.msra.mxu0 0
      %837 = vmatpush.bf16.msra.mxu0 0
      %838 = vmatpush.bf16.msra.mxu0 0
      %839 = vmatpush.bf16.msra.mxu0 0
      %840 = vmatpush.bf16.msra.mxu0 %v818
      %841 = vmatmul.bf16.gmra.mxu0 %v812
      %v842 = vpop.f32.mrf.mxu0
      %v843 = vadd.f32 0.0, %v842
      %v844 = vpop.f32.mrf.mxu0
      %845 = vdwg.mxu0
      %v846 = vadd.f32 %v789, %v830
      %v847 = vadd.f32 %v790, %v843
      %848 = vrot.lane.b32.xlu0 %v412, 112
      %v849 = vpop.permute.xlu0 %848
      %850 = vrot.lane.b32.xlu0 %v413, 112
      %v851 = vpop.permute.xlu0 %850
      %vm852 = vcmp.lt.s32.totalorder %v472, 112
      %v853 = vsel %vm852, %v849, %v851
      %v854 = vsel %vm852, %v851, %v849
      %s855 = scalar_lea.vmem %s2, 14
      %v856 = vld [vmem:[%s855] sm:$0x3]
      %v858 = vperm.slane %v856, 0
      %v859 = vperm.slane %v856, 1
      %v862 = vmul.f32 %v853, %v858
      %v863 = vmul.f32 %v854, %v859
      %s864 = scalar_lea.vmem %s6, 28
      %v865 = vld [vmem:[%s864] sm:$0xf]
      %v866 = vpack.c.bf16 %v862, %v862
      %v867 = vpack.c.bf16 %v863, %v863
      %v869 = vsel %vm507, %v865, 0
      %v872 = vsel %vm511, %v866, 0
      %v875 = vsel %vm511, %v867, 0
      %877 = vmatpush.bf16.msra.mxu0 0
      %878 = vmatpush.bf16.msra.mxu0 0
      %879 = vmatpush.bf16.msra.mxu0 0
      %880 = vmatpush.bf16.msra.mxu0 0
      %881 = vmatpush.bf16.msra.mxu0 0
      %882 = vmatpush.bf16.msra.mxu0 0
      %883 = vmatpush.bf16.msra.mxu0 0
      %884 = vmatpush.bf16.msra.mxu0 %v872
      %885 = vmatmul.bf16.gmra.mxu0 %v869
      %v886 = vpop.f32.mrf.mxu0
      %v887 = vadd.f32 0.0, %v886
      %v888 = vpop.f32.mrf.mxu0
      %889 = vdwg.mxu0
      %890 = vmatpush.bf16.msra.mxu0 0
      %891 = vmatpush.bf16.msra.mxu0 0
      %892 = vmatpush.bf16.msra.mxu0 0
      %893 = vmatpush.bf16.msra.mxu0 0
      %894 = vmatpush.bf16.msra.mxu0 0
      %895 = vmatpush.bf16.msra.mxu0 0
      %896 = vmatpush.bf16.msra.mxu0 0
      %897 = vmatpush.bf16.msra.mxu0 %v875
      %898 = vmatmul.bf16.gmra.mxu0 %v869
      %v899 = vpop.f32.mrf.mxu0
      %v900 = vadd.f32 0.0, %v899
      %v901 = vpop.f32.mrf.mxu0
      %902 = vdwg.mxu0
      %v903 = vadd.f32 %v846, %v887
      %v904 = vadd.f32 %v847, %v900
      %905 = vrot.lane.b32.xlu0 %v412, 111
      %v906 = vpop.permute.xlu0 %905
      %907 = vrot.lane.b32.xlu0 %v413, 111
      %v908 = vpop.permute.xlu0 %907
      %vm909 = vcmp.lt.s32.totalorder %v472, 111
      %v910 = vsel %vm909, %v906, %v908
      %v911 = vsel %vm909, %v908, %v906
      %s912 = scalar_lea.vmem %s2, 16
      %v913 = vld [vmem:[%s912] sm:$0x3]
      %v915 = vperm.slane %v913, 0
      %v916 = vperm.slane %v913, 1
      %v919 = vmul.f32 %v910, %v915
      %v920 = vmul.f32 %v911, %v916
      %s921 = scalar_lea.vmem %s6, 32
      %v922 = vld [vmem:[%s921] sm:$0xf]
      %v923 = vpack.c.bf16 %v919, %v919
      %v924 = vpack.c.bf16 %v920, %v920
      %v926 = vsel %vm507, %v922, 0
      %v929 = vsel %vm511, %v923, 0
      %v932 = vsel %vm511, %v924, 0
      %934 = vmatpush.bf16.msra.mxu0 0
      %935 = vmatpush.bf16.msra.mxu0 0
      %936 = vmatpush.bf16.msra.mxu0 0
      %937 = vmatpush.bf16.msra.mxu0 0
      %938 = vmatpush.bf16.msra.mxu0 0
      %939 = vmatpush.bf16.msra.mxu0 0
      %940 = vmatpush.bf16.msra.mxu0 0
      %941 = vmatpush.bf16.msra.mxu0 %v929
      %942 = vmatmul.bf16.gmra.mxu0 %v926
      %v943 = vpop.f32.mrf.mxu0
      %v944 = vadd.f32 0.0, %v943
      %v945 = vpop.f32.mrf.mxu0
      %946 = vdwg.mxu0
      %947 = vmatpush.bf16.msra.mxu0 0
      %948 = vmatpush.bf16.msra.mxu0 0
      %949 = vmatpush.bf16.msra.mxu0 0
      %950 = vmatpush.bf16.msra.mxu0 0
      %951 = vmatpush.bf16.msra.mxu0 0
      %952 = vmatpush.bf16.msra.mxu0 0
      %953 = vmatpush.bf16.msra.mxu0 0
      %954 = vmatpush.bf16.msra.mxu0 %v932
      %955 = vmatmul.bf16.gmra.mxu0 %v926
      %v956 = vpop.f32.mrf.mxu0
      %v957 = vadd.f32 0.0, %v956
      %v958 = vpop.f32.mrf.mxu0
      %959 = vdwg.mxu0
      %v960 = vadd.f32 %v903, %v944
      %v961 = vadd.f32 %v904, %v957
      %v962 = vadd.f32 %v451, %v960
      %v963 = vadd.f32 %v464, %v961
      %964 = vst [vmem:[%s356] sm:$0xff] %v962
      %965 = vst [vmem:[%s356 + $0x8] sm:$0xff] %v963
      %s966 = smul.u32 2, %s20
      %p967 = scmp.lt.s32.totalorder %s966, 3
      %s968 = scalar_select %p967, %s966, 3
      %s969 = smul.addr %s968, 8
      %s970 = scalar_lea.vmem %s9, %s969
      // Predicated region
      $region57: #{resnet_block_forward.3} parent=55 // pred_check
        %p971 = pneg %p237
      $region58: #{resnet_block_forward.3} parent=55 // pred_check_branch
        %973 = sbr.rel (%p971) target = $region60
      $region59: #{resnet_block_forward.3} parent=55 // pred_region
        %s974 = smul.u32 2, %s20
      $region60: #{resnet_block_forward.3} parent=55 // pred_fallthru
        _
    $region56: #{resnet_block_forward.3} parent=5 // pred_fallthru
      _
    %p975 = scmp.le.s32.totalorder 2, %s15
    // Predicated region
    $region61: #{resnet_block_forward.3} parent=5 // pred_check
      %p976 = pneg %p975
    $region62: #{resnet_block_forward.3} parent=5 // pred_check_branch
      %978 = sbr.rel (%p976) target = $region64
    $region63: #{resnet_block_forward.3} parent=5 // pred_region
      %s979 = ssub.s32 %s15, 2
      // Predicated region
      $region65: #{resnet_block_forward.3} parent=63 // pred_check
        %p980 = pneg %p243
      $region66: #{resnet_block_forward.3} parent=63 // pred_check_branch
        %982 = sbr.rel (%p980) target = $region68
      $region67: #{resnet_block_forward.3} parent=63 // pred_region
        %s983 = smul.u32 2, %s21
        %p984 = scmp.lt.s32.totalorder %s983, 3
        %s985 = scalar_select %p984, %s983, 3
        %s986 = smul.addr %s985, 8
        %s987 = scalar_lea.vmem %s9, %s986
      $region68: #{resnet_block_forward.3} parent=63 // pred_fallthru
        _
    $region64: #{resnet_block_forward.3} parent=5 // pred_fallthru
      _
  $region6: #{resnet_block_forward.3} parent=0 // loop_footer
    %s19 = sadd.s32 1, %s15
  $region7: #{resnet_block_forward.3} parent=0 // loop_footer_branch
    %14 = sbr.rel target = $region3
  $region8: #{resnet_block_forward.3} parent=0 // loop_exit
    _

// kernel: resnet_block_forward.2
$region0: #{resnet_block_forward.2}
  #allocation0 [shape = 'u32[]', space=smem, size = 0x4, offset = 0x4, fixed_abs, tag = 'smem constant byte address 0x4 - core index']
  #allocation1 [shape = 'u32[72,128]{1,0:T(1,128)}', space=vmem, size = 0x9000, scoped, tag = 'internal scratch']
  %s0 = inlined_call_operand.vmem [shape: f32[4,512], index: 0, kind: input, shape index: {}]
  %s1 = inlined_call_operand.vmem [shape: f32[9,1,256], index: 1, kind: input, shape index: {}]
  %s2 = inlined_call_operand.vmem [shape: f32[4,1], index: 2, kind: input, shape index: {}]
  %s3 = inlined_call_operand.vmem [shape: f32[4,1], index: 3, kind: input, shape index: {}]
  %s4 = inlined_call_operand.vmem [shape: bf16[9,8,4], index: 4, kind: input, shape index: {}]
  %s5 = inlined_call_operand.vmem [shape: f32[8,1], index: 5, kind: input, shape index: {}]
  %s6 = inlined_call_operand.vmem [shape: bf16[8,512], index: 6, kind: output, shape index: {0}]
  %s7 = inlined_call_operand.vmem [shape: f32[2,8,2], index: 7, kind: output, shape index: {1}]
  %8 = xla_tuple %s6, %s7
  %s9 = sld [smem:[#allocation0]]
  $region65: #{resnet_block_forward.2} parent=0
    _
  %s11 = ssub.s32 1, %s9
  %s12 = scalar_select 0, %s11, %s9
  loop: start=0, step=1, limit=4
  $region2: #{resnet_block_forward.2} parent=0 // loop_pre_header
    _
  $region3: #{resnet_block_forward.2} parent=0 // loop_header
    %s14 = sphi 0, %s18
    %p15 = scmp.ge.s32.totalorder %s14, 4
    %s24 = sphi 0, %s26
    %s27 = sphi 0, %s24
    %s28 = sphi 0, %s27
    %s44 = sphi 0, %s28
    %s48 = sphi 0, %s48
    %s50 = sphi 0, %s48
    %s51 = sphi 0, %s50
    %s65 = sphi 0, %s51
    %s69 = sphi 0, %s69
    %s71 = sphi 0, %s69
    %s72 = sphi 0, %s71
    %s86 = sphi 0, %s72
    %s90 = sphi 0, %s90
    %s92 = sphi 0, %s90
    %s93 = sphi 0, %s92
    %s107 = sphi 0, %s93
    %s111 = sphi 0, %s111
    %s113 = sphi 0, %s111
    %s114 = sphi 0, %s113
    %s128 = sphi 0, %s114
    %s132 = sphi 0, %s132
    %s134 = sphi 0, %s132
    %s135 = sphi 0, %s134
    %s149 = sphi 0, %s135
    %s155 = sphi 0, %s157
    %s158 = sphi 0, %s155
    %s159 = sphi 0, %s158
    %s175 = sphi 0, %s159
    %s181 = sphi 0, %s183
    %s184 = sphi 0, %s181
    %s185 = sphi 0, %s184
    %s201 = sphi 0, %s185
  $region4: #{resnet_block_forward.2} parent=0 // loop_header_branch
    %17 = sbr.rel (%p15) target = $region8
  $region5: #{resnet_block_forward.2} parent=0 // loop_body
    %s19 = ssub.s32 %s14, 1
    %s20 = ssub.s32 %s14, 2
    %s21 = sadd.s32 %s14, 1
    %s22 = ssub.s32 %s14, %s21
    %p23 = scmp.eq.s32.totalorder %s22, 0
    %s25 = sadd.s32 %s24, 1
    %s26 = scalar_select %p23, %s24, %s25
    %p29 = pneg %p23
    %p30 = scmp.eq.s32.totalorder %s14, 1
    %p31 = por %p29, %p30
    %p32 = scmp.ne.s32.totalorder %s24, %s27
    %p33 = scmp.eq.s32.totalorder %s14, 0
    %p34 = por %p32, %p33
    %p35 = scmp.ne.s32.totalorder %s24, %s27
    %p36 = scmp.eq.s32.totalorder %s19, 1
    %p37 = por %p35, %p36
    %p38 = scmp.ne.s32.totalorder %s27, %s28
    %p39 = scmp.eq.s32.totalorder %s19, 0
    %p40 = por %p38, %p39
    %p41 = scmp.ne.s32.totalorder %s27, %s28
    %p42 = scmp.eq.s32.totalorder %s20, 1
    %p43 = por %p41, %p42
    %p45 = scmp.ne.s32.totalorder %s28, %s44
    %p46 = scmp.eq.s32.totalorder %s20, 0
    %p47 = por %p45, %p46
    %s49 = sadd.s32 %s48, 1
    %p52 = scmp.eq.s32.totalorder %s14, 1
    %p53 = scmp.ne.s32.totalorder %s48, %s50
    %p54 = scmp.eq.s32.totalorder %s14, 0
    %p55 = por %p53, %p54
    %p56 = scmp.ne.s32.totalorder %s48, %s50
    %p57 = scmp.eq.s32.totalorder %s19, 1
    %p58 = por %p56, %p57
    %p59 = scmp.ne.s32.totalorder %s50, %s51
    %p60 = scmp.eq.s32.totalorder %s19, 0
    %p61 = por %p59, %p60
    %p62 = scmp.ne.s32.totalorder %s50, %s51
    %p63 = scmp.eq.s32.totalorder %s20, 1
    %p64 = por %p62, %p63
    %p66 = scmp.ne.s32.totalorder %s51, %s65
    %p67 = scmp.eq.s32.totalorder %s20, 0
    %p68 = por %p66, %p67
    %s70 = sadd.s32 %s69, 1
    %p73 = scmp.eq.s32.totalorder %s14, 1
    %p74 = scmp.ne.s32.totalorder %s69, %s71
    %p75 = scmp.eq.s32.totalorder %s14, 0
    %p76 = por %p74, %p75
    %p77 = scmp.ne.s32.totalorder %s69, %s71
    %p78 = scmp.eq.s32.totalorder %s19, 1
    %p79 = por %p77, %p78
    %p80 = scmp.ne.s32.totalorder %s71, %s72
    %p81 = scmp.eq.s32.totalorder %s19, 0
    %p82 = por %p80, %p81
    %p83 = scmp.ne.s32.totalorder %s71, %s72
    %p84 = scmp.eq.s32.totalorder %s20, 1
    %p85 = por %p83, %p84
    %p87 = scmp.ne.s32.totalorder %s72, %s86
    %p88 = scmp.eq.s32.totalorder %s20, 0
    %p89 = por %p87, %p88
    %s91 = sadd.s32 %s90, 1
    %p94 = scmp.eq.s32.totalorder %s14, 1
    %p95 = scmp.ne.s32.totalorder %s90, %s92
    %p96 = scmp.eq.s32.totalorder %s14, 0
    %p97 = por %p95, %p96
    %p98 = scmp.ne.s32.totalorder %s90, %s92
    %p99 = scmp.eq.s32.totalorder %s19, 1
    %p100 = por %p98, %p99
    %p101 = scmp.ne.s32.totalorder %s92, %s93
    %p102 = scmp.eq.s32.totalorder %s19, 0
    %p103 = por %p101, %p102
    %p104 = scmp.ne.s32.totalorder %s92, %s93
    %p105 = scmp.eq.s32.totalorder %s20, 1
    %p106 = por %p104, %p105
    %p108 = scmp.ne.s32.totalorder %s93, %s107
    %p109 = scmp.eq.s32.totalorder %s20, 0
    %p110 = por %p108, %p109
    %s112 = sadd.s32 %s111, 1
    %p115 = scmp.eq.s32.totalorder %s14, 1
    %p116 = scmp.ne.s32.totalorder %s111, %s113
    %p117 = scmp.eq.s32.totalorder %s14, 0
    %p118 = por %p116, %p117
    %p119 = scmp.ne.s32.totalorder %s111, %s113
    %p120 = scmp.eq.s32.totalorder %s19, 1
    %p121 = por %p119, %p120
    %p122 = scmp.ne.s32.totalorder %s113, %s114
    %p123 = scmp.eq.s32.totalorder %s19, 0
    %p124 = por %p122, %p123
    %p125 = scmp.ne.s32.totalorder %s113, %s114
    %p126 = scmp.eq.s32.totalorder %s20, 1
    %p127 = por %p125, %p126
    %p129 = scmp.ne.s32.totalorder %s114, %s128
    %p130 = scmp.eq.s32.totalorder %s20, 0
    %p131 = por %p129, %p130
    %s133 = sadd.s32 %s132, 1
    %p136 = scmp.eq.s32.totalorder %s14, 1
    %p137 = scmp.ne.s32.totalorder %s132, %s134
    %p138 = scmp.eq.s32.totalorder %s14, 0
    %p139 = por %p137, %p138
    %p140 = scmp.ne.s32.totalorder %s132, %s134
    %p141 = scmp.eq.s32.totalorder %s19, 1
    %p142 = por %p140, %p141
    %p143 = scmp.ne.s32.totalorder %s134, %s135
    %p144 = scmp.eq.s32.totalorder %s19, 0
    %p145 = por %p143, %p144
    %p146 = scmp.ne.s32.totalorder %s134, %s135
    %p147 = scmp.eq.s32.totalorder %s20, 1
    %p148 = por %p146, %p147
    %p150 = scmp.ne.s32.totalorder %s135, %s149
    %p151 = scmp.eq.s32.totalorder %s20, 0
    %p152 = por %p150, %p151
    %s153 = ssub.s32 %s14, %s21
    %p154 = scmp.eq.s32.totalorder %s153, 0
    %s156 = sadd.s32 %s155, 1
    %s157 = scalar_select %p154, %s155, %s156
    %p160 = pneg %p154
    %p161 = scmp.eq.s32.totalorder %s14, 1
    %p162 = por %p160, %p161
    %p163 = scmp.ne.s32.totalorder %s155, %s158
    %p164 = scmp.eq.s32.totalorder %s14, 0
    %p165 = por %p163, %p164
    %p166 = scmp.ne.s32.totalorder %s155, %s158
    %p167 = scmp.eq.s32.totalorder %s19, 1
    %p168 = por %p166, %p167
    %p169 = scmp.ne.s32.totalorder %s158, %s159
    %p170 = scmp.eq.s32.totalorder %s19, 0
    %p171 = por %p169, %p170
    %p172 = scmp.ne.s32.totalorder %s158, %s159
    %p173 = scmp.eq.s32.totalorder %s20, 1
    %p174 = por %p172, %p173
    %p176 = scmp.ne.s32.totalorder %s159, %s175
    %p177 = scmp.eq.s32.totalorder %s20, 0
    %p178 = por %p176, %p177
    %s179 = ssub.s32 %s14, %s21
    %p180 = scmp.eq.s32.totalorder %s179, 0
    %s182 = sadd.s32 %s181, 1
    %s183 = scalar_select %p180, %s181, %s182
    %p186 = pneg %p180
    %p187 = scmp.eq.s32.totalorder %s14, 1
    %p188 = por %p186, %p187
    %p189 = scmp.ne.s32.totalorder %s181, %s184
    %p190 = scmp.eq.s32.totalorder %s14, 0
    %p191 = por %p189, %p190
    %p192 = scmp.ne.s32.totalorder %s181, %s184
    %p193 = scmp.eq.s32.totalorder %s19, 1
    %p194 = por %p192, %p193
    %p195 = scmp.ne.s32.totalorder %s184, %s185
    %p196 = scmp.eq.s32.totalorder %s19, 0
    %p197 = por %p195, %p196
    %p198 = scmp.ne.s32.totalorder %s184, %s185
    %p199 = scmp.eq.s32.totalorder %s20, 1
    %p200 = por %p198, %p199
    %p202 = scmp.ne.s32.totalorder %s185, %s201
    %p203 = scmp.eq.s32.totalorder %s20, 0
    %p204 = por %p202, %p203
    %p205 = scmp.le.s32.totalorder 1, %s14
    %p206 = scmp.lt.s32.totalorder %s14, 3
    %p207 = pnand %p205, %p206
    %p208 = pneg %p207
    // Predicated region
    $region9: #{resnet_block_forward.2} parent=5 // pred_check
      _
    $region10: #{resnet_block_forward.2} parent=5 // pred_check_branch
      %210 = sbr.rel (%p207) target = $region12
    $region11: #{resnet_block_forward.2} parent=5 // pred_region
      %s211 = ssub.s32 %s14, 1
      // Predicated region
      $region13: #{resnet_block_forward.2} parent=11 // pred_check
        %p212 = pneg %p61
      $region14: #{resnet_block_forward.2} parent=11 // pred_check_branch
        %214 = sbr.rel (%p212) target = $region16
      $region15: #{resnet_block_forward.2} parent=11 // pred_region
        _
      $region16: #{resnet_block_forward.2} parent=11 // pred_fallthru
        _
      // Predicated region
      $region17: #{resnet_block_forward.2} parent=11 // pred_check
        %p215 = pneg %p82
      $region18: #{resnet_block_forward.2} parent=11 // pred_check_branch
        %217 = sbr.rel (%p215) target = $region20
      $region19: #{resnet_block_forward.2} parent=11 // pred_region
        _
      $region20: #{resnet_block_forward.2} parent=11 // pred_fallthru
        _
      // Predicated region
      $region21: #{resnet_block_forward.2} parent=11 // pred_check
        %p218 = pneg %p103
      $region22: #{resnet_block_forward.2} parent=11 // pred_check_branch
        %220 = sbr.rel (%p218) target = $region24
      $region23: #{resnet_block_forward.2} parent=11 // pred_region
        _
      $region24: #{resnet_block_forward.2} parent=11 // pred_fallthru
        _
      // Predicated region
      $region25: #{resnet_block_forward.2} parent=11 // pred_check
        %p221 = pneg %p124
      $region26: #{resnet_block_forward.2} parent=11 // pred_check_branch
        %223 = sbr.rel (%p221) target = $region28
      $region27: #{resnet_block_forward.2} parent=11 // pred_region
        _
      $region28: #{resnet_block_forward.2} parent=11 // pred_fallthru
        _
      // Predicated region
      $region29: #{resnet_block_forward.2} parent=11 // pred_check
        %p224 = pneg %p145
      $region30: #{resnet_block_forward.2} parent=11 // pred_check_branch
        %226 = sbr.rel (%p224) target = $region32
      $region31: #{resnet_block_forward.2} parent=11 // pred_region
        _
      $region32: #{resnet_block_forward.2} parent=11 // pred_fallthru
        _
    $region12: #{resnet_block_forward.2} parent=5 // pred_fallthru
      _
    %p227 = scmp.lt.s32.totalorder %s14, 2
    // Predicated region
    $region33: #{resnet_block_forward.2} parent=5 // pred_check
      %p228 = pneg %p227
    $region34: #{resnet_block_forward.2} parent=5 // pred_check_branch
      %230 = sbr.rel (%p228) target = $region36
    $region35: #{resnet_block_forward.2} parent=5 // pred_region
      // Predicated region
      $region37: #{resnet_block_forward.2} parent=35 // pred_check
        %p231 = pneg %p34
      $region38: #{resnet_block_forward.2} parent=35 // pred_check_branch
        %233 = sbr.rel (%p231) target = $region40
      $region39: #{resnet_block_forward.2} parent=35 // pred_region
        %s234 = smul.u32 2, %s14
        %p235 = scmp.lt.s32.totalorder %s234, 3
        %s236 = scalar_select %p235, %s234, 3
        %s237 = smul.addr %s236, 4
        %s238 = scalar_lea.vmem %s0, %s237
        %s239 = smul.u32 2, %s14
      $region40: #{resnet_block_forward.2} parent=35 // pred_fallthru
        _
    $region36: #{resnet_block_forward.2} parent=5 // pred_fallthru
      _
    %p240 = scmp.le.s32.totalorder 1, %s14
    %p241 = scmp.lt.s32.totalorder %s14, 3
    %p242 = pnand %p240, %p241
    %p243 = pneg %p242
    // Predicated region
    $region41: #{resnet_block_forward.2} parent=5 // pred_check
      _
    $region42: #{resnet_block_forward.2} parent=5 // pred_check_branch
      %245 = sbr.rel (%p242) target = $region44
    $region43: #{resnet_block_forward.2} parent=5 // pred_region
      %s246 = ssub.s32 %s14, 1
      %s247 = smul.u32 2, %s19
      %p248 = scmp.lt.s32.totalorder %s247, 3
      %s249 = scalar_select %p248, %s247, 3
      %s250 = smul.addr %s249, 4
      %s251 = scalar_lea.vmem %s0, %s250
      %p252 = pneg %p40
      %p253 = pneg %p37
      %p254 = pneg %p61
      %p255 = pneg %p58
      %p256 = pneg %p82
      %p257 = pneg %p79
      %p258 = pneg %p103
      %p259 = pneg %p100
      %p260 = pneg %p124
      %p261 = pneg %p121
      %p262 = pneg %p145
      %p263 = pneg %p142
      %p264 = pneg %p171
      %p265 = pneg %p168
      %s266 = smul.u32 2, %s19
      %p267 = scmp.lt.s32.totalorder %s266, 3
      %s268 = scalar_select %p267, %s266, 3
      %s269 = smul.addr %s268, 4
      %s270 = scalar_lea.vmem %s6, %s269
      %p271 = pneg %p197
      %p272 = pneg %p194
      %p273 = scmp.lt.s32.totalorder %s19, 1
      %s274 = scalar_select %p273, %s19, 1
      %s275 = smul.addr %s274, 8
      %s276 = scalar_lea.vmem %s7, %s275
      %s277 = smul.u32 2, %s19
      %p278 = scmp.lt.s32.totalorder %s277, 3
      %s279 = scalar_select %p278, %s277, 3
      %s280 = smul.addr %s279, 4
      %s281 = scalar_lea.vmem %s0, %s280
      %s282 = smul.u32 2, %s19
      %s283 = smul.u32 2, %s19
      %p284 = scmp.lt.s32.totalorder %s283, 3
      %s285 = scalar_select %p284, %s283, 3
      %s286 = smul.addr %s285, 4
      %s287 = scalar_lea.vmem %s6, %s286
      %s288 = smul.u32 2, %s19
      %p289 = scmp.lt.s32.totalorder %s19, 1
      %s290 = scalar_select %p289, %s19, 1
      %s291 = smul.addr %s290, 8
      %s292 = scalar_lea.vmem %s7, %s291
      %v294 = vld [vmem:[%s281] sm:$0xff]
      %v295 = vld [vmem:[%s2] sm:$0xf]
      %297 = vset.pattern.permute.xlu0 0
      %298 = vperm.xlu0 %297, %v295
      %v299 = vpop.permute.xlu0 %298
      %v301 = vunpack.c.l.s4 839922192
      %v302 = vunpack.c.0.s8 %v301
      %v303 = vperm.slane %v299, %v302
      %v305 = vmul.f32 %v294, %v303
      %v306 = vld [vmem:[%s3] sm:$0xf]
      %308 = vset.pattern.permute.xlu0 0
      %309 = vperm.xlu0 %308, %v306
      %v310 = vpop.permute.xlu0 %309
      %v312 = vunpack.c.l.s4 839922192
      %v313 = vunpack.c.0.s8 %v312
      %v314 = vperm.slane %v310, %v313
      %v316 = vadd.f32 %v305, %v314
      %v317 = vmul.f32 %v316, 0.01
      %v318 = vmax.f32 %v316, %v317
      %320 = vst [vmem:[#allocation1] ss:$2 sm:$0xff] %v318
      %v321 = vld.sshfl [vmem:[#allocation1] sm:$0xff pattern:$0x75316420]
      %v322 = vld.sshfl [vmem:[#allocation1 + $0x8] sm:$0xff pattern:$0x75316420]
      %325 = vrot.lane.b32.xlu0 %v321, 17
      %v326 = vpop.permute.xlu0 %325
      %327 = vrot.lane.b32.xlu0 %v322, 17
      %v328 = vpop.permute.xlu0 %327
      %v329 = vlaneseq
      %v330 = vand.u32 %v329, 127
      %vm331 = vcmp.lt.s32.totalorder %v330, 17
      %v332 = vsel %vm331, %v326, %v328
      %v333 = vsel %vm331, %v328, %v326
      %v334 = vld [vmem:[%s1] sm:$0x3]
      %v336 = vperm.slane %v334, 0
      %v337 = vperm.slane %v334, 1
      %v340 = vmul.f32 %v333, %v336
      %v341 = vmul.f32 %v332, %v337
      %v342 = vld [vmem:[%s4] sm:$0xf]
      %v343 = vpack.c.bf16 %v340, %v340
      %v344 = vpack.c.bf16 %v341, %v341
      %345 = vst [vmem:[#allocation1] ss:$2 sm:$0xff] %v318
      %v346 = vld.sshfl [vmem:[#allocation1] sm:$0xff pattern:$0x75316420]
      %v347 = vld.sshfl [vmem:[#allocation1 + $0x8] sm:$0xff pattern:$0x75316420]
      %350 = vrot.lane.b32.xlu0 %v346, 16
      %v351 = vpop.permute.xlu0 %350
      %352 = vrot.lane.b32.xlu0 %v347, 16
      %v353 = vpop.permute.xlu0 %352
      %vm354 = vcmp.lt.s32.totalorder %v330, 16
      %v355 = vsel %vm354, %v351, %v353
      %v356 = vsel %vm354, %v353, %v351
      %s357 = scalar_lea.vmem %s1, 2
      %v358 = vld [vmem:[%s357] sm:$0x3]
      %v360 = vperm.slane %v358, 0
      %v361 = vperm.slane %v358, 1
      %v364 = vmul.f32 %v356, %v360
      %v365 = vmul.f32 %v355, %v361
      %s366 = scalar_lea.vmem %s4, 4
      %v367 = vld [vmem:[%s366] sm:$0xf]
      %v368 = vpack.c.bf16 %v364, %v364
      %v369 = vpack.c.bf16 %v365, %v365
      %vm370 = vcmask 31744
      %v372 = vsel %vm370, %v367, 0
      %vm374 = vcmask 1041408
      %v376 = vsel %vm374, %v368, 0
      %v379 = vsel %vm374, %v369, 0
      %381 = vmatpush.bf16.msra.mxu0 0
      %382 = vmatpush.bf16.msra.mxu0 0
      %383 = vmatpush.bf16.msra.mxu0 0
      %384 = vmatpush.bf16.msra.mxu0 0
      %385 = vmatpush.bf16.msra.mxu0 0
      %386 = vmatpush.bf16.msra.mxu0 0
      %387 = vmatpush.bf16.msra.mxu0 0
      %388 = vmatpush.bf16.msra.mxu0 %v376
      %389 = vmatmul.bf16.gmra.mxu0 %v372
      %v390 = vpop.f32.mrf.mxu0
      %v391 = vadd.f32 0.0, %v390
      %v392 = vpop.f32.mrf.mxu0
      %393 = vdwg.mxu0
      %394 = vmatpush.bf16.msra.mxu0 0
      %395 = vmatpush.bf16.msra.mxu0 0
      %396 = vmatpush.bf16.msra.mxu0 0
      %397 = vmatpush.bf16.msra.mxu0 0
      %398 = vmatpush.bf16.msra.mxu0 0
      %399 = vmatpush.bf16.msra.mxu0 0
      %400 = vmatpush.bf16.msra.mxu0 0
      %401 = vmatpush.bf16.msra.mxu0 %v379
      %402 = vmatmul.bf16.gmra.mxu0 %v372
      %v403 = vpop.f32.mrf.mxu0
      %v404 = vadd.f32 0.0, %v403
      %v405 = vpop.f32.mrf.mxu0
      %406 = vdwg.mxu0
      %v408 = vsel %vm370, %v342, 0
      %v411 = vsel %vm374, %v343, 0
      %v414 = vsel %vm374, %v344, 0
      %416 = vmatpush.bf16.msra.mxu0 0
      %417 = vmatpush.bf16.msra.mxu0 0
      %418 = vmatpush.bf16.msra.mxu0 0
      %419 = vmatpush.bf16.msra.mxu0 0
      %420 = vmatpush.bf16.msra.mxu0 0
      %421 = vmatpush.bf16.msra.mxu0 0
      %422 = vmatpush.bf16.msra.mxu0 0
      %423 = vmatpush.bf16.msra.mxu0 %v411
      %424 = vmatmul.bf16.gmra.mxu0 %v408
      %v425 = vpop.f32.mrf.mxu0
      %v426 = vadd.f32 %v391, %v425
      %v427 = vpop.f32.mrf.mxu0
      %428 = vdwg.mxu0
      %429 = vmatpush.bf16.msra.mxu0 0
      %430 = vmatpush.bf16.msra.mxu0 0
      %431 = vmatpush.bf16.msra.mxu0 0
      %432 = vmatpush.bf16.msra.mxu0 0
      %433 = vmatpush.bf16.msra.mxu0 0
      %434 = vmatpush.bf16.msra.mxu0 0
      %435 = vmatpush.bf16.msra.mxu0 0
      %436 = vmatpush.bf16.msra.mxu0 %v414
      %437 = vmatmul.bf16.gmra.mxu0 %v408
      %v438 = vpop.f32.mrf.mxu0
      %v439 = vadd.f32 %v404, %v438
      %v440 = vpop.f32.mrf.mxu0
      %441 = vdwg.mxu0
      %442 = vst [vmem:[#allocation1] ss:$2 sm:$0xff] %v318
      %v443 = vld.sshfl [vmem:[#allocation1] sm:$0xff pattern:$0x75316420]
      %v444 = vld.sshfl [vmem:[#allocation1 + $0x8] sm:$0xff pattern:$0x75316420]
      %447 = vrot.lane.b32.xlu0 %v443, 15
      %v448 = vpop.permute.xlu0 %447
      %449 = vrot.lane.b32.xlu0 %v444, 15
      %v450 = vpop.permute.xlu0 %449
      %vm451 = vcmp.lt.s32.totalorder %v330, 15
      %v452 = vsel %vm451, %v448, %v450
      %v453 = vsel %vm451, %v450, %v448
      %s454 = scalar_lea.vmem %s1, 4
      %v455 = vld [vmem:[%s454] sm:$0x3]
      %v457 = vperm.slane %v455, 0
      %v458 = vperm.slane %v455, 1
      %v461 = vmul.f32 %v453, %v457
      %v462 = vmul.f32 %v452, %v458
      %s463 = scalar_lea.vmem %s4, 8
      %v464 = vld [vmem:[%s463] sm:$0xf]
      %v465 = vpack.c.bf16 %v461, %v461
      %v466 = vpack.c.bf16 %v462, %v462
      %v468 = vsel %vm370, %v464, 0
      %v471 = vsel %vm374, %v465, 0
      %v474 = vsel %vm374, %v466, 0
      %476 = vmatpush.bf16.msra.mxu0 0
      %477 = vmatpush.bf16.msra.mxu0 0
      %478 = vmatpush.bf16.msra.mxu0 0
      %479 = vmatpush.bf16.msra.mxu0 0
      %480 = vmatpush.bf16.msra.mxu0 0
      %481 = vmatpush.bf16.msra.mxu0 0
      %482 = vmatpush.bf16.msra.mxu0 0
      %483 = vmatpush.bf16.msra.mxu0 %v471
      %484 = vmatmul.bf16.gmra.mxu0 %v468
      %v485 = vpop.f32.mrf.mxu0
      %v486 = vadd.f32 0.0, %v485
      %v487 = vpop.f32.mrf.mxu0
      %488 = vdwg.mxu0
      %489 = vmatpush.bf16.msra.mxu0 0
      %490 = vmatpush.bf16.msra.mxu0 0
      %491 = vmatpush.bf16.msra.mxu0 0
      %492 = vmatpush.bf16.msra.mxu0 0
      %493 = vmatpush.bf16.msra.mxu0 0
      %494 = vmatpush.bf16.msra.mxu0 0
      %495 = vmatpush.bf16.msra.mxu0 0
      %496 = vmatpush.bf16.msra.mxu0 %v474
      %497 = vmatmul.bf16.gmra.mxu0 %v468
      %v498 = vpop.f32.mrf.mxu0
      %v499 = vadd.f32 0.0, %v498
      %v500 = vpop.f32.mrf.mxu0
      %501 = vdwg.mxu0
      %v502 = vadd.f32 %v426, %v486
      %v503 = vadd.f32 %v439, %v499
      %504 = vst [vmem:[#allocation1] ss:$2 sm:$0xff] %v318
      %v505 = vld.sshfl [vmem:[#allocation1] sm:$0xff pattern:$0x75316420]
      %v506 = vld.sshfl [vmem:[#allocation1 + $0x8] sm:$0xff pattern:$0x75316420]
      %509 = vrot.lane.b32.xlu0 %v505, 1
      %v510 = vpop.permute.xlu0 %509
      %511 = vrot.lane.b32.xlu0 %v506, 1
      %v512 = vpop.permute.xlu0 %511
      %vm513 = vcmp.lt.s32.totalorder %v330, 1
      %v514 = vsel %vm513, %v510, %v512
      %v515 = vsel %vm513, %v512, %v510
      %s516 = scalar_lea.vmem %s1, 6
      %v517 = vld [vmem:[%s516] sm:$0x3]
      %v519 = vperm.slane %v517, 0
      %v520 = vperm.slane %v517, 1
      %v523 = vmul.f32 %v515, %v519
      %v524 = vmul.f32 %v514, %v520
      %s525 = scalar_lea.vmem %s4, 12
      %v526 = vld [vmem:[%s525] sm:$0xf]
      %v527 = vpack.c.bf16 %v523, %v523
      %v528 = vpack.c.bf16 %v524, %v524
      %v530 = vsel %vm370, %v526, 0
      %v533 = vsel %vm374, %v527, 0
      %v536 = vsel %vm374, %v528, 0
      %538 = vmatpush.bf16.msra.mxu0 0
      %539 = vmatpush.bf16.msra.mxu0 0
      %540 = vmatpush.bf16.msra.mxu0 0
      %541 = vmatpush.bf16.msra.mxu0 0
      %542 = vmatpush.bf16.msra.mxu0 0
      %543 = vmatpush.bf16.msra.mxu0 0
      %544 = vmatpush.bf16.msra.mxu0 0
      %545 = vmatpush.bf16.msra.mxu0 %v533
      %546 = vmatmul.bf16.gmra.mxu0 %v530
      %v547 = vpop.f32.mrf.mxu0
      %v548 = vadd.f32 0.0, %v547
      %v549 = vpop.f32.mrf.mxu0
      %550 = vdwg.mxu0
      %551 = vmatpush.bf16.msra.mxu0 0
      %552 = vmatpush.bf16.msra.mxu0 0
      %553 = vmatpush.bf16.msra.mxu0 0
      %554 = vmatpush.bf16.msra.mxu0 0
      %555 = vmatpush.bf16.msra.mxu0 0
      %556 = vmatpush.bf16.msra.mxu0 0
      %557 = vmatpush.bf16.msra.mxu0 0
      %558 = vmatpush.bf16.msra.mxu0 %v536
      %559 = vmatmul.bf16.gmra.mxu0 %v530
      %v560 = vpop.f32.mrf.mxu0
      %v561 = vadd.f32 0.0, %v560
      %v562 = vpop.f32.mrf.mxu0
      %563 = vdwg.mxu0
      %v564 = vadd.f32 %v502, %v548
      %v565 = vadd.f32 %v503, %v561
      %s566 = scalar_lea.vmem %s4, 16
      %v567 = vld [vmem:[%s566] sm:$0xf]
      %568 = vst [vmem:[#allocation1] ss:$2 sm:$0xff] %v318
      %v569 = vld.sshfl [vmem:[#allocation1] sm:$0xff pattern:$0x75316420]
      %v570 = vld.sshfl [vmem:[#allocation1 + $0x8] sm:$0xff pattern:$0x75316420]
      %v573 = vpack.c.bf16 %v569, %v569
      %v574 = vpack.c.bf16 %v570, %v570
      %v576 = vsel %vm370, %v567, 0
      %v579 = vsel %vm374, %v573, 0
      %v582 = vsel %vm374, %v574, 0
      %584 = vmatpush.bf16.msra.mxu0 0
      %585 = vmatpush.bf16.msra.mxu0 0
      %586 = vmatpush.bf16.msra.mxu0 0
      %587 = vmatpush.bf16.msra.mxu0 0
      %588 = vmatpush.bf16.msra.mxu0 0
      %589 = vmatpush.bf16.msra.mxu0 0
      %590 = vmatpush.bf16.msra.mxu0 0
      %591 = vmatpush.bf16.msra.mxu0 %v579
      %592 = vmatmul.bf16.gmra.mxu0 %v576
      %v593 = vpop.f32.mrf.mxu0
      %v594 = vadd.f32 0.0, %v593
      %v595 = vpop.f32.mrf.mxu0
      %596 = vdwg.mxu0
      %597 = vmatpush.bf16.msra.mxu0 0
      %598 = vmatpush.bf16.msra.mxu0 0
      %599 = vmatpush.bf16.msra.mxu0 0
      %600 = vmatpush.bf16.msra.mxu0 0
      %601 = vmatpush.bf16.msra.mxu0 0
      %602 = vmatpush.bf16.msra.mxu0 0
      %603 = vmatpush.bf16.msra.mxu0 0
      %604 = vmatpush.bf16.msra.mxu0 %v582
      %605 = vmatmul.bf16.gmra.mxu0 %v576
      %v606 = vpop.f32.mrf.mxu0
      %v607 = vadd.f32 0.0, %v606
      %v608 = vpop.f32.mrf.mxu0
      %609 = vdwg.mxu0
      %v610 = vadd.f32 %v564, %v594
      %v611 = vadd.f32 %v565, %v607
      %612 = vst [vmem:[#allocation1] ss:$2 sm:$0xff] %v318
      %v613 = vld.sshfl [vmem:[#allocation1] sm:$0xff pattern:$0x75316420]
      %v614 = vld.sshfl [vmem:[#allocation1 + $0x8] sm:$0xff pattern:$0x75316420]
      %617 = vrot.lane.b32.xlu0 %v613, 127
      %v618 = vpop.permute.xlu0 %617
      %619 = vrot.lane.b32.xlu0 %v614, 127
      %v620 = vpop.permute.xlu0 %619
      %vm621 = vcmp.lt.s32.totalorder %v330, 127
      %v622 = vsel %vm621, %v618, %v620
      %v623 = vsel %vm621, %v620, %v618
      %s624 = scalar_lea.vmem %s1, 10
      %v625 = vld [vmem:[%s624] sm:$0x3]
      %v627 = vperm.slane %v625, 0
      %v628 = vperm.slane %v625, 1
      %v631 = vmul.f32 %v622, %v627
      %v632 = vmul.f32 %v623, %v628
      %s633 = scalar_lea.vmem %s4, 20
      %v634 = vld [vmem:[%s633] sm:$0xf]
      %v635 = vpack.c.bf16 %v631, %v631
      %v636 = vpack.c.bf16 %v632, %v632
      %v638 = vsel %vm370, %v634, 0
      %v641 = vsel %vm374, %v635, 0
      %v644 = vsel %vm374, %v636, 0
      %646 = vmatpush.bf16.msra.mxu0 0
      %647 = vmatpush.bf16.msra.mxu0 0
      %648 = vmatpush.bf16.msra.mxu0 0
      %649 = vmatpush.bf16.msra.mxu0 0
      %650 = vmatpush.bf16.msra.mxu0 0
      %651 = vmatpush.bf16.msra.mxu0 0
      %652 = vmatpush.bf16.msra.mxu0 0
      %653 = vmatpush.bf16.msra.mxu0 %v641
      %654 = vmatmul.bf16.gmra.mxu0 %v638
      %v655 = vpop.f32.mrf.mxu0
      %v656 = vadd.f32 0.0, %v655
      %v657 = vpop.f32.mrf.mxu0
      %658 = vdwg.mxu0
      %659 = vmatpush.bf16.msra.mxu0 0
      %660 = vmatpush.bf16.msra.mxu0 0
      %661 = vmatpush.bf16.msra.mxu0 0
      %662 = vmatpush.bf16.msra.mxu0 0
      %663 = vmatpush.bf16.msra.mxu0 0
      %664 = vmatpush.bf16.msra.mxu0 0
      %665 = vmatpush.bf16.msra.mxu0 0
      %666 = vmatpush.bf16.msra.mxu0 %v644
      %667 = vmatmul.bf16.gmra.mxu0 %v638
      %v668 = vpop.f32.mrf.mxu0
      %v669 = vadd.f32 0.0, %v668
      %v670 = vpop.f32.mrf.mxu0
      %671 = vdwg.mxu0
      %v672 = vadd.f32 %v610, %v656
      %v673 = vadd.f32 %v611, %v669
      %674 = vst [vmem:[#allocation1] ss:$2 sm:$0xff] %v318
      %v675 = vld.sshfl [vmem:[#allocation1] sm:$0xff pattern:$0x75316420]
      %v676 = vld.sshfl [vmem:[#allocation1 + $0x8] sm:$0xff pattern:$0x75316420]
      %679 = vrot.lane.b32.xlu0 %v675, 113
      %v680 = vpop.permute.xlu0 %679
      %681 = vrot.lane.b32.xlu0 %v676, 113
      %v682 = vpop.permute.xlu0 %681
      %vm683 = vcmp.lt.s32.totalorder %v330, 113
      %v684 = vsel %vm683, %v680, %v682
      %v685 = vsel %vm683, %v682, %v680
      %s686 = scalar_lea.vmem %s1, 12
      %v687 = vld [vmem:[%s686] sm:$0x3]
      %v689 = vperm.slane %v687, 0
      %v690 = vperm.slane %v687, 1
      %v693 = vmul.f32 %v684, %v689
      %v694 = vmul.f32 %v685, %v690
      %s695 = scalar_lea.vmem %s4, 24
      %v696 = vld [vmem:[%s695] sm:$0xf]
      %v697 = vpack.c.bf16 %v693, %v693
      %v698 = vpack.c.bf16 %v694, %v694
      %v700 = vsel %vm370, %v696, 0
      %v703 = vsel %vm374, %v697, 0
      %v706 = vsel %vm374, %v698, 0
      %708 = vmatpush.bf16.msra.mxu0 0
      %709 = vmatpush.bf16.msra.mxu0 0
      %710 = vmatpush.bf16.msra.mxu0 0
      %711 = vmatpush.bf16.msra.mxu0 0
      %712 = vmatpush.bf16.msra.mxu0 0
      %713 = vmatpush.bf16.msra.mxu0 0
      %714 = vmatpush.bf16.msra.mxu0 0
      %715 = vmatpush.bf16.msra.mxu0 %v703
      %716 = vmatmul.bf16.gmra.mxu0 %v700
      %v717 = vpop.f32.mrf.mxu0
      %v718 = vadd.f32 0.0, %v717
      %v719 = vpop.f32.mrf.mxu0
      %720 = vdwg.mxu0
      %721 = vmatpush.bf16.msra.mxu0 0
      %722 = vmatpush.bf16.msra.mxu0 0
      %723 = vmatpush.bf16.msra.mxu0 0
      %724 = vmatpush.bf16.msra.mxu0 0
      %725 = vmatpush.bf16.msra.mxu0 0
      %726 = vmatpush.bf16.msra.mxu0 0
      %727 = vmatpush.bf16.msra.mxu0 0
      %728 = vmatpush.bf16.msra.mxu0 %v706
      %729 = vmatmul.bf16.gmra.mxu0 %v700
      %v730 = vpop.f32.mrf.mxu0
      %v731 = vadd.f32 0.0, %v730
      %v732 = vpop.f32.mrf.mxu0
      %733 = vdwg.mxu0
      %v734 = vadd.f32 %v672, %v718
      %v735 = vadd.f32 %v673, %v731
      %736 = vst [vmem:[#allocation1] ss:$2 sm:$0xff] %v318
      %v737 = vld.sshfl [vmem:[#allocation1] sm:$0xff pattern:$0x75316420]
      %v738 = vld.sshfl [vmem:[#allocation1 + $0x8] sm:$0xff pattern:$0x75316420]
      %741 = vrot.lane.b32.xlu0 %v737, 112
      %v742 = vpop.permute.xlu0 %741
      %743 = vrot.lane.b32.xlu0 %v738, 112
      %v744 = vpop.permute.xlu0 %743
      %vm745 = vcmp.lt.s32.totalorder %v330, 112
      %v746 = vsel %vm745, %v742, %v744
      %v747 = vsel %vm745, %v744, %v742
      %s748 = scalar_lea.vmem %s1, 14
      %v749 = vld [vmem:[%s748] sm:$0x3]
      %v751 = vperm.slane %v749, 0
      %v752 = vperm.slane %v749, 1
      %v755 = vmul.f32 %v746, %v751
      %v756 = vmul.f32 %v747, %v752
      %s757 = scalar_lea.vmem %s4, 28
      %v758 = vld [vmem:[%s757] sm:$0xf]
      %v759 = vpack.c.bf16 %v755, %v755
      %v760 = vpack.c.bf16 %v756, %v756
      %v762 = vsel %vm370, %v758, 0
      %v765 = vsel %vm374, %v759, 0
      %v768 = vsel %vm374, %v760, 0
      %770 = vmatpush.bf16.msra.mxu0 0
      %771 = vmatpush.bf16.msra.mxu0 0
      %772 = vmatpush.bf16.msra.mxu0 0
      %773 = vmatpush.bf16.msra.mxu0 0
      %774 = vmatpush.bf16.msra.mxu0 0
      %775 = vmatpush.bf16.msra.mxu0 0
      %776 = vmatpush.bf16.msra.mxu0 0
      %777 = vmatpush.bf16.msra.mxu0 %v765
      %778 = vmatmul.bf16.gmra.mxu0 %v762
      %v779 = vpop.f32.mrf.mxu0
      %v780 = vadd.f32 0.0, %v779
      %v781 = vpop.f32.mrf.mxu0
      %782 = vdwg.mxu0
      %783 = vmatpush.bf16.msra.mxu0 0
      %784 = vmatpush.bf16.msra.mxu0 0
      %785 = vmatpush.bf16.msra.mxu0 0
      %786 = vmatpush.bf16.msra.mxu0 0
      %787 = vmatpush.bf16.msra.mxu0 0
      %788 = vmatpush.bf16.msra.mxu0 0
      %789 = vmatpush.bf16.msra.mxu0 0
      %790 = vmatpush.bf16.msra.mxu0 %v768
      %791 = vmatmul.bf16.gmra.mxu0 %v762
      %v792 = vpop.f32.mrf.mxu0
      %v793 = vadd.f32 0.0, %v792
      %v794 = vpop.f32.mrf.mxu0
      %795 = vdwg.mxu0
      %v796 = vadd.f32 %v734, %v780
      %v797 = vadd.f32 %v735, %v793
      %798 = vst [vmem:[#allocation1] ss:$2 sm:$0xff] %v318
      %v799 = vld.sshfl [vmem:[#allocation1] sm:$0xff pattern:$0x75316420]
      %v800 = vld.sshfl [vmem:[#allocation1 + $0x8] sm:$0xff pattern:$0x75316420]
      %803 = vrot.lane.b32.xlu0 %v799, 111
      %v804 = vpop.permute.xlu0 %803
      %805 = vrot.lane.b32.xlu0 %v800, 111
      %v806 = vpop.permute.xlu0 %805
      %vm807 = vcmp.lt.s32.totalorder %v330, 111
      %v808 = vsel %vm807, %v804, %v806
      %v809 = vsel %vm807, %v806, %v804
      %s810 = scalar_lea.vmem %s1, 16
      %v811 = vld [vmem:[%s810] sm:$0x3]
      %v813 = vperm.slane %v811, 0
      %v814 = vperm.slane %v811, 1
      %v817 = vmul.f32 %v808, %v813
      %v818 = vmul.f32 %v809, %v814
      %s819 = scalar_lea.vmem %s4, 32
      %v820 = vld [vmem:[%s819] sm:$0xf]
      %v821 = vpack.c.bf16 %v817, %v817
      %v822 = vpack.c.bf16 %v818, %v818
      %v824 = vsel %vm370, %v820, 0
      %v827 = vsel %vm374, %v821, 0
      %v830 = vsel %vm374, %v822, 0
      %832 = vmatpush.bf16.msra.mxu0 0
      %833 = vmatpush.bf16.msra.mxu0 0
      %834 = vmatpush.bf16.msra.mxu0 0
      %835 = vmatpush.bf16.msra.mxu0 0
      %836 = vmatpush.bf16.msra.mxu0 0
      %837 = vmatpush.bf16.msra.mxu0 0
      %838 = vmatpush.bf16.msra.mxu0 0
      %839 = vmatpush.bf16.msra.mxu0 %v827
      %840 = vmatmul.bf16.gmra.mxu0 %v824
      %v841 = vpop.f32.mrf.mxu0
      %v842 = vadd.f32 0.0, %v841
      %v843 = vpop.f32.mrf.mxu0
      %844 = vdwg.mxu0
      %845 = vmatpush.bf16.msra.mxu0 0
      %846 = vmatpush.bf16.msra.mxu0 0
      %847 = vmatpush.bf16.msra.mxu0 0
      %848 = vmatpush.bf16.msra.mxu0 0
      %849 = vmatpush.bf16.msra.mxu0 0
      %850 = vmatpush.bf16.msra.mxu0 0
      %851 = vmatpush.bf16.msra.mxu0 0
      %852 = vmatpush.bf16.msra.mxu0 %v830
      %853 = vmatmul.bf16.gmra.mxu0 %v824
      %v854 = vpop.f32.mrf.mxu0
      %v855 = vadd.f32 0.0, %v854
      %v856 = vpop.f32.mrf.mxu0
      %857 = vdwg.mxu0
      %v858 = vadd.f32 %v796, %v842
      %v859 = vadd.f32 %v797, %v855
      %v860 = vld [vmem:[%s5] sm:$0xff]
      %862 = vset.pattern.permute.xlu0 0
      %863 = vperm.xlu0 %862, %v860
      %v864 = vpop.permute.xlu0 %863
      %v866 = vadd.f32 %v858, %v864
      %v867 = vadd.f32 %v859, %v864
      %v868 = vadd.f32 %v866, %v867
      %869 = vadd.xlane.f32.xlu0 %v868
      %v870 = vpop.xlane.xlu0 %869
      %v871 = vmul.f32 %v866, %v866
      %v872 = vmul.f32 %v867, %v867
      %v873 = vadd.f32 %v871, %v872
      %874 = vadd.xlane.f32.xlu0 %v873
      %v875 = vpop.xlane.xlu0 %874
      %vm876 = vcmask 7168
      %v877 = vsel %vm876, %v870, %v875
      %vm878 = vcmask 15360
      %879 = vst.msk [vmem:[%s292] sm:$0xff] %vm878, %v877
      %v880 = vpack.c.bf16 %v867, %v866
      %881 = vst [vmem:[%s287] sm:$0xff] %v880
      %s882 = smul.u32 2, %s19
      %p883 = scmp.lt.s32.totalorder %s882, 3
      %s884 = scalar_select %p883, %s882, 3
      %s885 = smul.addr %s884, 4
      %s886 = scalar_lea.vmem %s6, %s885
      %p887 = scmp.lt.s32.totalorder %s19, 1
      %s888 = scalar_select %p887, %s19, 1
      %s889 = smul.addr %s888, 8
      %s890 = scalar_lea.vmem %s7, %s889
      // Predicated region
      $region45: #{resnet_block_forward.2} parent=43 // pred_check
        %p891 = pneg %p168
      $region46: #{resnet_block_forward.2} parent=43 // pred_check_branch
        %893 = sbr.rel (%p891) target = $region48
      $region47: #{resnet_block_forward.2} parent=43 // pred_region
        %s894 = smul.u32 2, %s19
      $region48: #{resnet_block_forward.2} parent=43 // pred_fallthru
        _
      // Predicated region
      $region49: #{resnet_block_forward.2} parent=43 // pred_check
        %p895 = pneg %p194
      $region50: #{resnet_block_forward.2} parent=43 // pred_check_branch
        %897 = sbr.rel (%p895) target = $region52
      $region51: #{resnet_block_forward.2} parent=43 // pred_region
        _
      $region52: #{resnet_block_forward.2} parent=43 // pred_fallthru
        _
    $region44: #{resnet_block_forward.2} parent=5 // pred_fallthru
      _
    %p898 = scmp.le.s32.totalorder 2, %s14
    // Predicated region
    $region53: #{resnet_block_forward.2} parent=5 // pred_check
      %p899 = pneg %p898
    $region54: #{resnet_block_forward.2} parent=5 // pred_check_branch
      %901 = sbr.rel (%p899) target = $region56
    $region55: #{resnet_block_forward.2} parent=5 // pred_region
      %s902 = ssub.s32 %s14, 2
      // Predicated region
      $region57: #{resnet_block_forward.2} parent=55 // pred_check
        %p903 = pneg %p174
      $region58: #{resnet_block_forward.2} parent=55 // pred_check_branch
        %905 = sbr.rel (%p903) target = $region60
      $region59: #{resnet_block_forward.2} parent=55 // pred_region
        %s906 = smul.u32 2, %s20
        %p907 = scmp.lt.s32.totalorder %s906, 3
        %s908 = scalar_select %p907, %s906, 3
        %s909 = smul.addr %s908, 4
        %s910 = scalar_lea.vmem %s6, %s909
      $region60: #{resnet_block_forward.2} parent=55 // pred_fallthru
        _
      // Predicated region
      $region61: #{resnet_block_forward.2} parent=55 // pred_check
        %p911 = pneg %p200
      $region62: #{resnet_block_forward.2} parent=55 // pred_check_branch
        %913 = sbr.rel (%p911) target = $region64
      $region63: #{resnet_block_forward.2} parent=55 // pred_region
        %p914 = scmp.lt.s32.totalorder %s20, 1
        %s915 = scalar_select %p914, %s20, 1
        %s916 = smul.addr %s915, 8
        %s917 = scalar_lea.vmem %s7, %s916
      $region64: #{resnet_block_forward.2} parent=55 // pred_fallthru
        _
    $region56: #{resnet_block_forward.2} parent=5 // pred_fallthru
      _
  $region6: #{resnet_block_forward.2} parent=0 // loop_footer
    %s18 = sadd.s32 1, %s14
  $region7: #{resnet_block_forward.2} parent=0 // loop_footer_branch
    %13 = sbr.rel target = $region3
  $region8: #{resnet_block_forward.2} parent=0 // loop_exit
    _

</llo_original>
